<compile_context>
chip_gen: v6e
topology: v6e:2x2x1
jax: 0.10.0
libtpu: 0.0.40
codegen_flags: <defaults>
</compile_context>

<pallas_src>
import jax
import jax.numpy as jnp
from jax.experimental import pallas as pl
from jax.experimental.pallas import tpu as pltpu

N = 16        # number of graph nodes
F = 4         # node features
HID = 32      # hidden channels of first GCNConv
T_TILE = 8    # timesteps processed per grid step
PROWS = 8     # rows of the packed parameter slab (F + 3, padded to 8)


def gcn_kernel(a_ref,      # VMEM (resident): A_hat            [N, N]
               x_ref,      # VMEM (streamed): node features    [T_TILE, N, F]
               w_ref,      # VMEM (resident): packed params    [PROWS, HID]
               out_ref):   # VMEM: output block                [1, N, T_TILE]
    # Packed parameter slab layout (rows):
    #   0 .. F-1 : W1   [F, HID]
    #   F        : b1   [HID]
    #   F+1      : W2^T [HID]      (second GCNConv weight, HID -> 1)
    #   F+2      : b2   (element [0] used)
    A = a_ref[...]                              # [N, N]
    W1 = w_ref[0:F, :]                          # [F, HID]
    b1 = w_ref[F:F + 1, :]                      # [1, HID]
    w2 = w_ref[F + 1:F + 2, :]                  # [1, HID]
    b2 = w_ref[F + 2:F + 3, 0:1]                # [1, 1]

    y_cols = []
    for t in range(T_TILE):                     # unrolled, T_TILE small & static
        x_t = x_ref[t]                          # [N, F]
        # ---- GCNConv 1, reassociated: (A_hat @ X) @ W1 + b1, then ReLU ----
        ax = jnp.dot(A, x_t, preferred_element_type=jnp.float32)      # [N, F]
        h = jnp.dot(ax, W1, preferred_element_type=jnp.float32) + b1  # [N, HID]
        h = jnp.maximum(h, 0.0)                                       # F.relu
        # ---- GCNConv 2, step 1: h @ W2 as VPU multiply + 32-lane reduce ----
        y_cols.append(jnp.sum(h * w2, axis=-1, keepdims=True))        # [N, 1]

    # ---- GCNConv 2, step 2: one batched A_hat application over the tile ----
    y_mat = jnp.concatenate(y_cols, axis=1)                           # [N, T_TILE]
    out_ref[0] = jnp.dot(A, y_mat, preferred_element_type=jnp.float32) + b2


def build_gcn_norm(edge_index, edge_weight, num_nodes):
    """Dense symmetric GCN normalization with self-loops (fill value 1).

    A_hat[dst, src] = d^{-1/2}[dst] * w * d^{-1/2}[src], deg w/ self-loops.
    Computed ONCE per graph (hoisted out of the per-step forward).
    """
    src, dst = edge_index[0], edge_index[1]
    A = jnp.zeros((num_nodes, num_nodes), jnp.float32).at[dst, src].add(edge_weight)
    A = A + jnp.eye(num_nodes, dtype=jnp.float32)
    deg = A.sum(axis=1)
    dinv = jnp.where(deg > 0, jax.lax.rsqrt(deg), 0.0)
    return dinv[:, None] * A * dinv[None, :]


def init_params(key):
    ks = jax.random.split(key, 4)
    u = lambda k, shape, s=0.1: jax.random.uniform(k, shape, jnp.float32, -s, s)
    return dict(
        w1=u(ks[0], (F, HID)),     # GCNConv(F, 32) weight, stored [in, out]
        b1=u(ks[1], (HID,)),
        w2=u(ks[2], (HID, 1)),     # GCNConv(32, 1) weight, stored [in, out]
        b2=u(ks[3], (1,)),
    )


def pack_params(params):
    """Pack all weights/biases into one [PROWS, HID] f32 slab (single DMA)."""
    slab = jnp.zeros((PROWS, HID), jnp.float32)
    slab = slab.at[0:F, :].set(params["w1"])
    slab = slab.at[F, :].set(params["b1"])
    slab = slab.at[F + 1, :].set(params["w2"][:, 0])
    slab = slab.at[F + 2, 0].set(params["b2"][0])
    return slab


@jax.jit
def gcn_forward(x_seq, a_hat, slab):
    """Batched forward over T timesteps sharing one graph.

    x_seq: [T, N, F]; a_hat: [N, N]; slab: [PROWS, HID].  Returns [T, N, 1].
    """
    T = x_seq.shape[0]
    assert T % T_TILE == 0, "T must be a multiple of T_TILE"
    G = T // T_TILE

    out = pl.pallas_call(
        gcn_kernel,
        out_shape=jax.ShapeDtypeStruct((G, N, T_TILE), jnp.float32),
        grid=(G,),
        in_specs=[
            pl.BlockSpec((N, N), lambda g: (0, 0)),             # A_hat resident
            pl.BlockSpec((T_TILE, N, F), lambda g: (g, 0, 0)),  # X streamed
            pl.BlockSpec((PROWS, HID), lambda g: (0, 0)),       # params resident
        ],
        out_specs=pl.BlockSpec((1, N, T_TILE), lambda g: (g, 0, 0)),
        compiler_params=pltpu.CompilerParams(
            dimension_semantics=("parallel",)),                 # both TCs on v7x
    )(a_hat, x_seq, slab)

    # [G, N, T_TILE] -> [G, T_TILE, N] -> [T, N, 1]
    return out.transpose(0, 2, 1).reshape(T, N)[..., None]


def gcn_reference(x_seq, a_hat, params):
    """Pure-JAX reference matching the PyTorch module semantics."""
    def step(x):
        h = a_hat @ (x @ params["w1"]) + params["b1"]
        h = jnp.maximum(h, 0.0)
        return a_hat @ (h @ params["w2"]) + params["b2"]
    return jax.vmap(step)(x_seq)


if __name__ == "__main__":
    key = jax.random.PRNGKey(0)
    k_x, k_w, k_p = jax.random.split(key, 3)

    T = 16  # temporal batch (e.g. CHICKENPOX timesteps), multiple of T_TILE
    x_seq = jax.random.normal(k_x, (T, N, F), jnp.float32)

    # deterministic ring graph (both directions), positive edge weights
    idx = jnp.arange(N, dtype=jnp.int32)
    src = jnp.concatenate([idx, (idx + 1) % N])
    dst = jnp.concatenate([(idx + 1) % N, idx])
    edge_index = jnp.stack([src, dst])                      # [2, 2N]
    edge_weight = jax.random.uniform(k_w, (2 * N,), jnp.float32, 0.5, 1.5)

    params = init_params(k_p)

    # Hoisted, once-per-graph / once-per-params precomputation.
    a_hat = build_gcn_norm(edge_index, edge_weight, N)
    slab = pack_params(params)

    out = gcn_forward(x_seq, a_hat, slab)
    jax.block_until_ready(out)
    assert out.shape == (T, N, 1)

    ref = gcn_reference(x_seq, a_hat, params)
    assert jnp.allclose(out, ref, rtol=1e-4, atol=1e-4), "mismatch vs reference"

    print("KERNEL_OK")
</pallas_src>

<mosaic_0001>
module attributes {stable_mosaic.version = 11 : i64} {
  func.func @gcn_kernel(%arg0: i32, %arg1: memref<16x16xf32, #tpu.memory_space<vmem>>, %arg2: memref<8x16x4xf32, #tpu.memory_space<vmem>>, %arg3: memref<8x32xf32, #tpu.memory_space<vmem>>, %arg4: memref<1x16x8xf32, #tpu.memory_space<vmem>>) attributes {dimension_semantics = [#tpu.dimension_semantics<parallel>], iteration_bounds = array<i64: 2>, scalar_prefetch = 0 : i64, scratch_operands = 0 : i64, tpu.core_type = #tpu.core_type<tc>, window_params = [{pipeline_mode = #tpu.pipeline_mode<synchronous>, transform_indices = @transform_0, window_bounds = array<i64: 16, 16>}, {transform_indices = @transform_1, window_bounds = array<i64: 8, 16, 4>}, {pipeline_mode = #tpu.pipeline_mode<synchronous>, transform_indices = @transform_2, window_bounds = array<i64: 8, 32>}, {transform_indices = @transform_3, window_bounds = array<i64: 1, 16, 8>}]} {
    %c0 = arith.constant 0 : index
    %c0_0 = arith.constant 0 : index
    %0 = vector.load %arg1[%c0, %c0_0] : memref<16x16xf32, #tpu.memory_space<vmem>>, vector<16x16xf32>
    %c0_1 = arith.constant 0 : index
    %c0_2 = arith.constant 0 : index
    %1 = vector.load %arg3[%c0_1, %c0_2] : memref<8x32xf32, #tpu.memory_space<vmem>>, vector<4x32xf32>
    %c4 = arith.constant 4 : index
    %c0_3 = arith.constant 0 : index
    %2 = vector.load %arg3[%c4, %c0_3] : memref<8x32xf32, #tpu.memory_space<vmem>>, vector<1x32xf32>
    %c5 = arith.constant 5 : index
    %c0_4 = arith.constant 0 : index
    %3 = vector.load %arg3[%c5, %c0_4] : memref<8x32xf32, #tpu.memory_space<vmem>>, vector<1x32xf32>
    %c6 = arith.constant 6 : index
    %c0_5 = arith.constant 0 : index
    %4 = vector.load %arg3[%c6, %c0_5] : memref<8x32xf32, #tpu.memory_space<vmem>>, vector<1x1xf32>
    %c0_6 = arith.constant 0 : index
    %c0_7 = arith.constant 0 : index
    %c0_8 = arith.constant 0 : index
    %5 = vector.load %arg2[%c0_6, %c0_7, %c0_8] : memref<8x16x4xf32, #tpu.memory_space<vmem>>, vector<1x16x4xf32>
    %6 = vector.shape_cast %5 : vector<1x16x4xf32> to vector<16x4xf32>
    %cst = arith.constant dense<0.000000e+00> : vector<16x4xf32>
    %7 = tpu.matmul %0, %6, %cst {dimension_numbers = #tpu.dot_dimension_numbers<[1], [0], [0], [1], [0, 0, 1, 1], [], []>} : vector<16x16xf32>, vector<16x4xf32>, vector<16x4xf32> -> vector<16x4xf32>
    %cst_9 = arith.constant dense<0.000000e+00> : vector<16x32xf32>
    %8 = tpu.matmul %7, %1, %cst_9 {dimension_numbers = #tpu.dot_dimension_numbers<[1], [0], [0], [1], [0, 0, 1, 1], [], []>} : vector<16x4xf32>, vector<4x32xf32>, vector<16x32xf32> -> vector<16x32xf32>
    %9 = vector.broadcast %2 : vector<1x32xf32> to vector<16x32xf32>
    %10 = arith.addf %8, %9 : vector<16x32xf32>
    %cst_10 = arith.constant 0.000000e+00 : f32
    %11 = vector.broadcast %cst_10 : f32 to vector<16x32xf32>
    %12 = arith.maximumf %10, %11 : vector<16x32xf32>
    %13 = vector.broadcast %3 : vector<1x32xf32> to vector<16x32xf32>
    %14 = arith.mulf %12, %13 : vector<16x32xf32>
    %cst_11 = arith.constant dense<0.000000e+00> : vector<16xf32>
    %15 = vector.multi_reduction <add>, %14, %cst_11 [1] : vector<16x32xf32> to vector<16xf32>
    %16 = vector.shape_cast %15 : vector<16xf32> to vector<16x1xf32>
    %c1 = arith.constant 1 : index
    %c0_12 = arith.constant 0 : index
    %c0_13 = arith.constant 0 : index
    %17 = vector.load %arg2[%c1, %c0_12, %c0_13] : memref<8x16x4xf32, #tpu.memory_space<vmem>>, vector<1x16x4xf32>
    %18 = vector.shape_cast %17 : vector<1x16x4xf32> to vector<16x4xf32>
    %cst_14 = arith.constant dense<0.000000e+00> : vector<16x4xf32>
    %19 = tpu.matmul %0, %18, %cst_14 {dimension_numbers = #tpu.dot_dimension_numbers<[1], [0], [0], [1], [0, 0, 1, 1], [], []>} : vector<16x16xf32>, vector<16x4xf32>, vector<16x4xf32> -> vector<16x4xf32>
    %cst_15 = arith.constant dense<0.000000e+00> : vector<16x32xf32>
    %20 = tpu.matmul %19, %1, %cst_15 {dimension_numbers = #tpu.dot_dimension_numbers<[1], [0], [0], [1], [0, 0, 1, 1], [], []>} : vector<16x4xf32>, vector<4x32xf32>, vector<16x32xf32> -> vector<16x32xf32>
    %21 = vector.broadcast %2 : vector<1x32xf32> to vector<16x32xf32>
    %22 = arith.addf %20, %21 : vector<16x32xf32>
    %cst_16 = arith.constant 0.000000e+00 : f32
    %23 = vector.broadcast %cst_16 : f32 to vector<16x32xf32>
    %24 = arith.maximumf %22, %23 : vector<16x32xf32>
    %25 = vector.broadcast %3 : vector<1x32xf32> to vector<16x32xf32>
    %26 = arith.mulf %24, %25 : vector<16x32xf32>
    %cst_17 = arith.constant dense<0.000000e+00> : vector<16xf32>
    %27 = vector.multi_reduction <add>, %26, %cst_17 [1] : vector<16x32xf32> to vector<16xf32>
    %28 = vector.shape_cast %27 : vector<16xf32> to vector<16x1xf32>
    %c2 = arith.constant 2 : index
    %c0_18 = arith.constant 0 : index
    %c0_19 = arith.constant 0 : index
    %29 = vector.load %arg2[%c2, %c0_18, %c0_19] : memref<8x16x4xf32, #tpu.memory_space<vmem>>, vector<1x16x4xf32>
    %30 = vector.shape_cast %29 : vector<1x16x4xf32> to vector<16x4xf32>
    %cst_20 = arith.constant dense<0.000000e+00> : vector<16x4xf32>
    %31 = tpu.matmul %0, %30, %cst_20 {dimension_numbers = #tpu.dot_dimension_numbers<[1], [0], [0], [1], [0, 0, 1, 1], [], []>} : vector<16x16xf32>, vector<16x4xf32>, vector<16x4xf32> -> vector<16x4xf32>
    %cst_21 = arith.constant dense<0.000000e+00> : vector<16x32xf32>
    %32 = tpu.matmul %31, %1, %cst_21 {dimension_numbers = #tpu.dot_dimension_numbers<[1], [0], [0], [1], [0, 0, 1, 1], [], []>} : vector<16x4xf32>, vector<4x32xf32>, vector<16x32xf32> -> vector<16x32xf32>
    %33 = vector.broadcast %2 : vector<1x32xf32> to vector<16x32xf32>
    %34 = arith.addf %32, %33 : vector<16x32xf32>
    %cst_22 = arith.constant 0.000000e+00 : f32
    %35 = vector.broadcast %cst_22 : f32 to vector<16x32xf32>
    %36 = arith.maximumf %34, %35 : vector<16x32xf32>
    %37 = vector.broadcast %3 : vector<1x32xf32> to vector<16x32xf32>
    %38 = arith.mulf %36, %37 : vector<16x32xf32>
    %cst_23 = arith.constant dense<0.000000e+00> : vector<16xf32>
    %39 = vector.multi_reduction <add>, %38, %cst_23 [1] : vector<16x32xf32> to vector<16xf32>
    %40 = vector.shape_cast %39 : vector<16xf32> to vector<16x1xf32>
    %c3 = arith.constant 3 : index
    %c0_24 = arith.constant 0 : index
    %c0_25 = arith.constant 0 : index
    %41 = vector.load %arg2[%c3, %c0_24, %c0_25] : memref<8x16x4xf32, #tpu.memory_space<vmem>>, vector<1x16x4xf32>
    %42 = vector.shape_cast %41 : vector<1x16x4xf32> to vector<16x4xf32>
    %cst_26 = arith.constant dense<0.000000e+00> : vector<16x4xf32>
    %43 = tpu.matmul %0, %42, %cst_26 {dimension_numbers = #tpu.dot_dimension_numbers<[1], [0], [0], [1], [0, 0, 1, 1], [], []>} : vector<16x16xf32>, vector<16x4xf32>, vector<16x4xf32> -> vector<16x4xf32>
    %cst_27 = arith.constant dense<0.000000e+00> : vector<16x32xf32>
    %44 = tpu.matmul %43, %1, %cst_27 {dimension_numbers = #tpu.dot_dimension_numbers<[1], [0], [0], [1], [0, 0, 1, 1], [], []>} : vector<16x4xf32>, vector<4x32xf32>, vector<16x32xf32> -> vector<16x32xf32>
    %45 = vector.broadcast %2 : vector<1x32xf32> to vector<16x32xf32>
    %46 = arith.addf %44, %45 : vector<16x32xf32>
    %cst_28 = arith.constant 0.000000e+00 : f32
    %47 = vector.broadcast %cst_28 : f32 to vector<16x32xf32>
    %48 = arith.maximumf %46, %47 : vector<16x32xf32>
    %49 = vector.broadcast %3 : vector<1x32xf32> to vector<16x32xf32>
    %50 = arith.mulf %48, %49 : vector<16x32xf32>
    %cst_29 = arith.constant dense<0.000000e+00> : vector<16xf32>
    %51 = vector.multi_reduction <add>, %50, %cst_29 [1] : vector<16x32xf32> to vector<16xf32>
    %52 = vector.shape_cast %51 : vector<16xf32> to vector<16x1xf32>
    %c4_30 = arith.constant 4 : index
    %c0_31 = arith.constant 0 : index
    %c0_32 = arith.constant 0 : index
    %53 = vector.load %arg2[%c4_30, %c0_31, %c0_32] : memref<8x16x4xf32, #tpu.memory_space<vmem>>, vector<1x16x4xf32>
    %54 = vector.shape_cast %53 : vector<1x16x4xf32> to vector<16x4xf32>
    %cst_33 = arith.constant dense<0.000000e+00> : vector<16x4xf32>
    %55 = tpu.matmul %0, %54, %cst_33 {dimension_numbers = #tpu.dot_dimension_numbers<[1], [0], [0], [1], [0, 0, 1, 1], [], []>} : vector<16x16xf32>, vector<16x4xf32>, vector<16x4xf32> -> vector<16x4xf32>
    %cst_34 = arith.constant dense<0.000000e+00> : vector<16x32xf32>
    %56 = tpu.matmul %55, %1, %cst_34 {dimension_numbers = #tpu.dot_dimension_numbers<[1], [0], [0], [1], [0, 0, 1, 1], [], []>} : vector<16x4xf32>, vector<4x32xf32>, vector<16x32xf32> -> vector<16x32xf32>
    %57 = vector.broadcast %2 : vector<1x32xf32> to vector<16x32xf32>
    %58 = arith.addf %56, %57 : vector<16x32xf32>
    %cst_35 = arith.constant 0.000000e+00 : f32
    %59 = vector.broadcast %cst_35 : f32 to vector<16x32xf32>
    %60 = arith.maximumf %58, %59 : vector<16x32xf32>
    %61 = vector.broadcast %3 : vector<1x32xf32> to vector<16x32xf32>
    %62 = arith.mulf %60, %61 : vector<16x32xf32>
    %cst_36 = arith.constant dense<0.000000e+00> : vector<16xf32>
    %63 = vector.multi_reduction <add>, %62, %cst_36 [1] : vector<16x32xf32> to vector<16xf32>
    %64 = vector.shape_cast %63 : vector<16xf32> to vector<16x1xf32>
    %c5_37 = arith.constant 5 : index
    %c0_38 = arith.constant 0 : index
    %c0_39 = arith.constant 0 : index
    %65 = vector.load %arg2[%c5_37, %c0_38, %c0_39] : memref<8x16x4xf32, #tpu.memory_space<vmem>>, vector<1x16x4xf32>
    %66 = vector.shape_cast %65 : vector<1x16x4xf32> to vector<16x4xf32>
    %cst_40 = arith.constant dense<0.000000e+00> : vector<16x4xf32>
    %67 = tpu.matmul %0, %66, %cst_40 {dimension_numbers = #tpu.dot_dimension_numbers<[1], [0], [0], [1], [0, 0, 1, 1], [], []>} : vector<16x16xf32>, vector<16x4xf32>, vector<16x4xf32> -> vector<16x4xf32>
    %cst_41 = arith.constant dense<0.000000e+00> : vector<16x32xf32>
    %68 = tpu.matmul %67, %1, %cst_41 {dimension_numbers = #tpu.dot_dimension_numbers<[1], [0], [0], [1], [0, 0, 1, 1], [], []>} : vector<16x4xf32>, vector<4x32xf32>, vector<16x32xf32> -> vector<16x32xf32>
    %69 = vector.broadcast %2 : vector<1x32xf32> to vector<16x32xf32>
    %70 = arith.addf %68, %69 : vector<16x32xf32>
    %cst_42 = arith.constant 0.000000e+00 : f32
    %71 = vector.broadcast %cst_42 : f32 to vector<16x32xf32>
    %72 = arith.maximumf %70, %71 : vector<16x32xf32>
    %73 = vector.broadcast %3 : vector<1x32xf32> to vector<16x32xf32>
    %74 = arith.mulf %72, %73 : vector<16x32xf32>
    %cst_43 = arith.constant dense<0.000000e+00> : vector<16xf32>
    %75 = vector.multi_reduction <add>, %74, %cst_43 [1] : vector<16x32xf32> to vector<16xf32>
    %76 = vector.shape_cast %75 : vector<16xf32> to vector<16x1xf32>
    %c6_44 = arith.constant 6 : index
    %c0_45 = arith.constant 0 : index
    %c0_46 = arith.constant 0 : index
    %77 = vector.load %arg2[%c6_44, %c0_45, %c0_46] : memref<8x16x4xf32, #tpu.memory_space<vmem>>, vector<1x16x4xf32>
    %78 = vector.shape_cast %77 : vector<1x16x4xf32> to vector<16x4xf32>
    %cst_47 = arith.constant dense<0.000000e+00> : vector<16x4xf32>
    %79 = tpu.matmul %0, %78, %cst_47 {dimension_numbers = #tpu.dot_dimension_numbers<[1], [0], [0], [1], [0, 0, 1, 1], [], []>} : vector<16x16xf32>, vector<16x4xf32>, vector<16x4xf32> -> vector<16x4xf32>
    %cst_48 = arith.constant dense<0.000000e+00> : vector<16x32xf32>
    %80 = tpu.matmul %79, %1, %cst_48 {dimension_numbers = #tpu.dot_dimension_numbers<[1], [0], [0], [1], [0, 0, 1, 1], [], []>} : vector<16x4xf32>, vector<4x32xf32>, vector<16x32xf32> -> vector<16x32xf32>
    %81 = vector.broadcast %2 : vector<1x32xf32> to vector<16x32xf32>
    %82 = arith.addf %80, %81 : vector<16x32xf32>
    %cst_49 = arith.constant 0.000000e+00 : f32
    %83 = vector.broadcast %cst_49 : f32 to vector<16x32xf32>
    %84 = arith.maximumf %82, %83 : vector<16x32xf32>
    %85 = vector.broadcast %3 : vector<1x32xf32> to vector<16x32xf32>
    %86 = arith.mulf %84, %85 : vector<16x32xf32>
    %cst_50 = arith.constant dense<0.000000e+00> : vector<16xf32>
    %87 = vector.multi_reduction <add>, %86, %cst_50 [1] : vector<16x32xf32> to vector<16xf32>
    %88 = vector.shape_cast %87 : vector<16xf32> to vector<16x1xf32>
    %c7 = arith.constant 7 : index
    %c0_51 = arith.constant 0 : index
    %c0_52 = arith.constant 0 : index
    %89 = vector.load %arg2[%c7, %c0_51, %c0_52] : memref<8x16x4xf32, #tpu.memory_space<vmem>>, vector<1x16x4xf32>
    %90 = vector.shape_cast %89 : vector<1x16x4xf32> to vector<16x4xf32>
    %cst_53 = arith.constant dense<0.000000e+00> : vector<16x4xf32>
    %91 = tpu.matmul %0, %90, %cst_53 {dimension_numbers = #tpu.dot_dimension_numbers<[1], [0], [0], [1], [0, 0, 1, 1], [], []>} : vector<16x16xf32>, vector<16x4xf32>, vector<16x4xf32> -> vector<16x4xf32>
    %cst_54 = arith.constant dense<0.000000e+00> : vector<16x32xf32>
    %92 = tpu.matmul %91, %1, %cst_54 {dimension_numbers = #tpu.dot_dimension_numbers<[1], [0], [0], [1], [0, 0, 1, 1], [], []>} : vector<16x4xf32>, vector<4x32xf32>, vector<16x32xf32> -> vector<16x32xf32>
    %93 = vector.broadcast %2 : vector<1x32xf32> to vector<16x32xf32>
    %94 = arith.addf %92, %93 : vector<16x32xf32>
    %cst_55 = arith.constant 0.000000e+00 : f32
    %95 = vector.broadcast %cst_55 : f32 to vector<16x32xf32>
    %96 = arith.maximumf %94, %95 : vector<16x32xf32>
    %97 = vector.broadcast %3 : vector<1x32xf32> to vector<16x32xf32>
    %98 = arith.mulf %96, %97 : vector<16x32xf32>
    %cst_56 = arith.constant dense<0.000000e+00> : vector<16xf32>
    %99 = vector.multi_reduction <add>, %98, %cst_56 [1] : vector<16x32xf32> to vector<16xf32>
    %100 = vector.shape_cast %99 : vector<16xf32> to vector<16x1xf32>
    %101 = tpu.concatenate %16, %28, %40, %52, %64, %76, %88, %100 in 1 : vector<16x1xf32>, vector<16x1xf32>, vector<16x1xf32>, vector<16x1xf32>, vector<16x1xf32>, vector<16x1xf32>, vector<16x1xf32>, vector<16x1xf32> -> vector<16x8xf32>
    %cst_57 = arith.constant dense<0.000000e+00> : vector<16x8xf32>
    %102 = tpu.matmul %0, %101, %cst_57 {dimension_numbers = #tpu.dot_dimension_numbers<[1], [0], [0], [1], [0, 0, 1, 1], [], []>} : vector<16x16xf32>, vector<16x8xf32>, vector<16x8xf32> -> vector<16x8xf32>
    %103 = vector.broadcast %4 : vector<1x1xf32> to vector<16x8xf32>
    %104 = arith.addf %102, %103 : vector<16x8xf32>
    %c0_58 = arith.constant 0 : index
    %c0_59 = arith.constant 0 : index
    %c0_60 = arith.constant 0 : index
    %105 = vector.load %arg4[%c0_58, %c0_59, %c0_60] : memref<1x16x8xf32, #tpu.memory_space<vmem>>, vector<1x16x8xf32>
    %106 = vector.shape_cast %105 : vector<1x16x8xf32> to vector<16x8xf32>
    %107 = vector.shape_cast %104 : vector<16x8xf32> to vector<1x16x8xf32>
    tpu.vector_store %arg4[%c0_58, %c0_59, %c0_60], %107 {strides = array<i32>} : memref<1x16x8xf32, #tpu.memory_space<vmem>>, vector<1x16x8xf32>,
    return
  }
  func.func @transform_0(%arg0: i32) -> (i32, i32) {
    %c0_i32 = arith.constant 0 : i32
    %c0_i32_0 = arith.constant 0 : i32
    %c0_i32_1 = arith.constant 0 : i32
    return %c0_i32, %c0_i32_0 : i32, i32
  }
  func.func @transform_1(%arg0: i32) -> (i32, i32, i32) {
    %c0_i32 = arith.constant 0 : i32
    %c0_i32_0 = arith.constant 0 : i32
    %c0_i32_1 = arith.constant 0 : i32
    return %arg0, %c0_i32, %c0_i32_0 : i32, i32, i32
  }
  func.func @transform_2(%arg0: i32) -> (i32, i32) {
    %c0_i32 = arith.constant 0 : i32
    %c0_i32_0 = arith.constant 0 : i32
    %c0_i32_1 = arith.constant 0 : i32
    return %c0_i32, %c0_i32_0 : i32, i32
  }
  func.func @transform_3(%arg0: i32) -> (i32, i32, i32) {
    %c0_i32 = arith.constant 0 : i32
    %c0_i32_0 = arith.constant 0 : i32
    %c0_i32_1 = arith.constant 0 : i32
    return %arg0, %c0_i32, %c0_i32_0 : i32, i32, i32
  }
}

</mosaic_0001>

<llo_original>
// kernel: gcn_forward.1
$region0: #{gcn_forward.1}
  #allocation0 [shape = 'u32[]', space=smem, size = 0x4, offset = 0x4, fixed_abs, tag = 'smem constant byte address 0x4 - core index']
  #allocation1 [shape = 'u32[144,128]{1,0:T(1,128)}', space=vmem, size = 0x12000, scoped, tag = 'internal scratch']
  %s0 = inlined_call_operand.vmem [shape: f32[16,16], index: 0, kind: input, shape index: {}]
  %s1 = inlined_call_operand.vmem [shape: f32[16,16,4], index: 1, kind: input, shape index: {}]
  %s2 = inlined_call_operand.vmem [shape: f32[8,32], index: 2, kind: input, shape index: {}]
  %s3 = inlined_call_operand.vmem [shape: f32[2,16,8], index: 3, kind: output, shape index: {}]
  %s4 = sld [smem:[#allocation0]]
  $region45: #{gcn_forward.1} parent=0
    _
  %s6 = ssub.s32 1, %s4
  %s7 = scalar_select 0, %s6, %s4
  loop: start=0, step=1, limit=4
  $region2: #{gcn_forward.1} parent=0 // loop_pre_header
    _
  $region3: #{gcn_forward.1} parent=0 // loop_header
    %s9 = sphi 0, %s13
    %p10 = scmp.ge.s32.totalorder %s9, 4
    %s17 = sphi 0, %s17
    %s19 = sphi 0, %s17
    %s20 = sphi 0, %s19
    %s34 = sphi 0, %s20
    %s40 = sphi 0, %s42
    %s43 = sphi 0, %s40
    %s44 = sphi 0, %s43
    %s60 = sphi 0, %s44
    %s64 = sphi 0, %s64
    %s66 = sphi 0, %s64
    %s67 = sphi 0, %s66
    %s81 = sphi 0, %s67
    %s87 = sphi 0, %s89
    %s90 = sphi 0, %s87
    %s91 = sphi 0, %s90
    %s107 = sphi 0, %s91
  $region4: #{gcn_forward.1} parent=0 // loop_header_branch
    %12 = sbr.rel (%p10) target = $region8
  $region5: #{gcn_forward.1} parent=0 // loop_body
    %s14 = ssub.s32 %s9, 1
    %s15 = ssub.s32 %s9, 2
    %s16 = sadd.s32 %s9, 1
    %s18 = sadd.s32 %s17, 1
    %p21 = scmp.eq.s32.totalorder %s9, 1
    %p22 = scmp.ne.s32.totalorder %s17, %s19
    %p23 = scmp.eq.s32.totalorder %s9, 0
    %p24 = por %p22, %p23
    %p25 = scmp.ne.s32.totalorder %s17, %s19
    %p26 = scmp.eq.s32.totalorder %s14, 1
    %p27 = por %p25, %p26
    %p28 = scmp.ne.s32.totalorder %s19, %s20
    %p29 = scmp.eq.s32.totalorder %s14, 0
    %p30 = por %p28, %p29
    %p31 = scmp.ne.s32.totalorder %s19, %s20
    %p32 = scmp.eq.s32.totalorder %s15, 1
    %p33 = por %p31, %p32
    %p35 = scmp.ne.s32.totalorder %s20, %s34
    %p36 = scmp.eq.s32.totalorder %s15, 0
    %p37 = por %p35, %p36
    %s38 = ssub.s32 %s9, %s16
    %p39 = scmp.eq.s32.totalorder %s38, 0
    %s41 = sadd.s32 %s40, 1
    %s42 = scalar_select %p39, %s40, %s41
    %p45 = pneg %p39
    %p46 = scmp.eq.s32.totalorder %s9, 1
    %p47 = por %p45, %p46
    %p48 = scmp.ne.s32.totalorder %s40, %s43
    %p49 = scmp.eq.s32.totalorder %s9, 0
    %p50 = por %p48, %p49
    %p51 = scmp.ne.s32.totalorder %s40, %s43
    %p52 = scmp.eq.s32.totalorder %s14, 1
    %p53 = por %p51, %p52
    %p54 = scmp.ne.s32.totalorder %s43, %s44
    %p55 = scmp.eq.s32.totalorder %s14, 0
    %p56 = por %p54, %p55
    %p57 = scmp.ne.s32.totalorder %s43, %s44
    %p58 = scmp.eq.s32.totalorder %s15, 1
    %p59 = por %p57, %p58
    %p61 = scmp.ne.s32.totalorder %s44, %s60
    %p62 = scmp.eq.s32.totalorder %s15, 0
    %p63 = por %p61, %p62
    %s65 = sadd.s32 %s64, 1
    %p68 = scmp.eq.s32.totalorder %s9, 1
    %p69 = scmp.ne.s32.totalorder %s64, %s66
    %p70 = scmp.eq.s32.totalorder %s9, 0
    %p71 = por %p69, %p70
    %p72 = scmp.ne.s32.totalorder %s64, %s66
    %p73 = scmp.eq.s32.totalorder %s14, 1
    %p74 = por %p72, %p73
    %p75 = scmp.ne.s32.totalorder %s66, %s67
    %p76 = scmp.eq.s32.totalorder %s14, 0
    %p77 = por %p75, %p76
    %p78 = scmp.ne.s32.totalorder %s66, %s67
    %p79 = scmp.eq.s32.totalorder %s15, 1
    %p80 = por %p78, %p79
    %p82 = scmp.ne.s32.totalorder %s67, %s81
    %p83 = scmp.eq.s32.totalorder %s15, 0
    %p84 = por %p82, %p83
    %s85 = ssub.s32 %s9, %s16
    %p86 = scmp.eq.s32.totalorder %s85, 0
    %s88 = sadd.s32 %s87, 1
    %s89 = scalar_select %p86, %s87, %s88
    %p92 = pneg %p86
    %p93 = scmp.eq.s32.totalorder %s9, 1
    %p94 = por %p92, %p93
    %p95 = scmp.ne.s32.totalorder %s87, %s90
    %p96 = scmp.eq.s32.totalorder %s9, 0
    %p97 = por %p95, %p96
    %p98 = scmp.ne.s32.totalorder %s87, %s90
    %p99 = scmp.eq.s32.totalorder %s14, 1
    %p100 = por %p98, %p99
    %p101 = scmp.ne.s32.totalorder %s90, %s91
    %p102 = scmp.eq.s32.totalorder %s14, 0
    %p103 = por %p101, %p102
    %p104 = scmp.ne.s32.totalorder %s90, %s91
    %p105 = scmp.eq.s32.totalorder %s15, 1
    %p106 = por %p104, %p105
    %p108 = scmp.ne.s32.totalorder %s91, %s107
    %p109 = scmp.eq.s32.totalorder %s15, 0
    %p110 = por %p108, %p109
    %p111 = scmp.le.s32.totalorder 1, %s9
    %p112 = scmp.lt.s32.totalorder %s9, 3
    %p113 = pnand %p111, %p112
    %p114 = pneg %p113
    // Predicated region
    $region9: #{gcn_forward.1} parent=5 // pred_check
      _
    $region10: #{gcn_forward.1} parent=5 // pred_check_branch
      %116 = sbr.rel (%p113) target = $region12
    $region11: #{gcn_forward.1} parent=5 // pred_region
      %s117 = ssub.s32 %s9, 1
      // Predicated region
      $region13: #{gcn_forward.1} parent=11 // pred_check
        %p118 = pneg %p30
      $region14: #{gcn_forward.1} parent=11 // pred_check_branch
        %120 = sbr.rel (%p118) target = $region16
      $region15: #{gcn_forward.1} parent=11 // pred_region
        _
      $region16: #{gcn_forward.1} parent=11 // pred_fallthru
        _
      // Predicated region
      $region17: #{gcn_forward.1} parent=11 // pred_check
        %p121 = pneg %p77
      $region18: #{gcn_forward.1} parent=11 // pred_check_branch
        %123 = sbr.rel (%p121) target = $region20
      $region19: #{gcn_forward.1} parent=11 // pred_region
        _
      $region20: #{gcn_forward.1} parent=11 // pred_fallthru
        _
    $region12: #{gcn_forward.1} parent=5 // pred_fallthru
      _
    %p124 = scmp.lt.s32.totalorder %s9, 2
    // Predicated region
    $region21: #{gcn_forward.1} parent=5 // pred_check
      %p125 = pneg %p124
    $region22: #{gcn_forward.1} parent=5 // pred_check_branch
      %127 = sbr.rel (%p125) target = $region24
    $region23: #{gcn_forward.1} parent=5 // pred_region
      // Predicated region
      $region25: #{gcn_forward.1} parent=23 // pred_check
        %p128 = pneg %p50
      $region26: #{gcn_forward.1} parent=23 // pred_check_branch
        %130 = sbr.rel (%p128) target = $region28
      $region27: #{gcn_forward.1} parent=23 // pred_region
        %s131 = smul.u32 8, %s9
        %p132 = scmp.lt.s32.totalorder %s131, 15
        %s133 = scalar_select %p132, %s131, 15
        %s134 = smul.addr %s133, 2
        %s135 = smul.addr %s134, 8
        %s136 = scalar_lea.vmem %s1, %s135
        %s137 = smul.u32 8, %s9
      $region28: #{gcn_forward.1} parent=23 // pred_fallthru
        _
    $region24: #{gcn_forward.1} parent=5 // pred_fallthru
      _
    %p138 = scmp.le.s32.totalorder 1, %s9
    %p139 = scmp.lt.s32.totalorder %s9, 3
    %p140 = pnand %p138, %p139
    %p141 = pneg %p140
    // Predicated region
    $region29: #{gcn_forward.1} parent=5 // pred_check
      _
    $region30: #{gcn_forward.1} parent=5 // pred_check_branch
      %143 = sbr.rel (%p140) target = $region32
    $region31: #{gcn_forward.1} parent=5 // pred_region
      %s144 = ssub.s32 %s9, 1
      %p145 = pneg %p30
      %p146 = pneg %p27
      %s147 = smul.u32 8, %s14
      %p148 = scmp.lt.s32.totalorder %s147, 15
      %s149 = scalar_select %p148, %s147, 15
      %s150 = smul.addr %s149, 2
      %s151 = smul.addr %s150, 8
      %s152 = scalar_lea.vmem %s1, %s151
      %p153 = pneg %p56
      %p154 = pneg %p53
      %p155 = pneg %p77
      %p156 = pneg %p74
      %p157 = pneg %p103
      %p158 = pneg %p100
      %p159 = scmp.lt.s32.totalorder %s14, 1
      %s160 = scalar_select %p159, %s14, 1
      %s161 = smul.addr %s160, 2
      %s162 = smul.addr %s161, 8
      %s163 = scalar_lea.vmem %s3, %s162
      %s164 = smul.u32 8, %s14
      %p165 = scmp.lt.s32.totalorder %s164, 15
      %s166 = scalar_select %p165, %s164, 15
      %s167 = smul.addr %s166, 2
      %s168 = smul.addr %s167, 8
      %s169 = scalar_lea.vmem %s1, %s168
      %s170 = smul.u32 8, %s14
      %p171 = scmp.lt.s32.totalorder %s14, 1
      %s172 = scalar_select %p171, %s14, 1
      %s173 = smul.addr %s172, 2
      %s174 = smul.addr %s173, 8
      %s175 = scalar_lea.vmem %s3, %s174
      %v176 = vld [vmem:[%s0] sm:$0xff]
      %v177 = vld [vmem:[%s0 + $0x8] sm:$0xff]
      %v178 = vld [vmem:[%s2] sm:$0xf]
      %v179 = vld [vmem:[%s2 + $0x4] sm:$0x1]
      %v180 = vld [vmem:[%s2 + $0x5] sm:$0x1]
      %v181 = vld [vmem:[%s2 + $0x6] sm:$0x1]
      %v182 = vld [vmem:[%s169] sm:$0xff]
      %v183 = vld [vmem:[%s169 + $0x8] sm:$0xff]
      %vm184 = vcmask 130048
      %v186 = vsel %vm184, %v176, 0
      %v189 = vsel %vm184, %v177, 0
      %191 = vmatprep.subr.mxu0 0.0
      %192 = vmatpush1.msra.mxu0 0.0
      %193 = vmatprep.subr.mxu0 0.0
      %194 = vmatpush1.msra.mxu0 0.0
      %195 = vmatprep.subr.mxu0 0.0
      %196 = vmatpush1.msra.mxu0 0.0
      %197 = vmatprep.subr.mxu0 0.0
      %198 = vmatpush1.msra.mxu0 0.0
      %199 = vmatprep.subr.mxu0 0.0
      %200 = vmatpush1.msra.mxu0 0.0
      %201 = vmatprep.subr.mxu0 0.0
      %202 = vmatpush1.msra.mxu0 0.0
      %203 = vmatprep.subr.mxu0 0.0
      %204 = vmatpush1.msra.mxu0 0.0
      %205 = vmatprep.subr.mxu0 0.0
      %206 = vmatpush1.msra.mxu0 0.0
      %207 = vmatprep.subr.mxu0 0.0
      %208 = vmatpush1.msra.mxu0 0.0
      %209 = vmatprep.subr.mxu0 0.0
      %210 = vmatpush1.msra.mxu0 0.0
      %211 = vmatprep.subr.mxu0 0.0
      %212 = vmatpush1.msra.mxu0 0.0
      %213 = vmatprep.subr.mxu0 0.0
      %214 = vmatpush1.msra.mxu0 0.0
      %215 = vmatprep.subr.mxu0 0.0
      %216 = vmatpush1.msra.mxu0 0.0
      %217 = vmatprep.subr.mxu0 0.0
      %218 = vmatpush1.msra.mxu0 0.0
      %219 = vmatprep.subr.mxu0 0.0
      %220 = vmatpush1.msra.mxu0 %v183
      %221 = vmatprep.subr.mxu0 0.0
      %222 = vmatpush1.msra.mxu0 %v182
      %223 = vmatprep.subr.mxu0 0.0
      %224 = vmatpush2.msra.mxu0 0.0
      %225 = vmatprep.subr.mxu0 0.0
      %226 = vmatpush2.msra.mxu0 0.0
      %227 = vmatprep.subr.mxu0 0.0
      %228 = vmatpush2.msra.mxu0 0.0
      %229 = vmatprep.subr.mxu0 0.0
      %230 = vmatpush2.msra.mxu0 0.0
      %231 = vmatprep.subr.mxu0 0.0
      %232 = vmatpush2.msra.mxu0 0.0
      %233 = vmatprep.subr.mxu0 0.0
      %234 = vmatpush2.msra.mxu0 0.0
      %235 = vmatprep.subr.mxu0 0.0
      %236 = vmatpush2.msra.mxu0 0.0
      %237 = vmatprep.subr.mxu0 0.0
      %238 = vmatpush2.msra.mxu0 0.0
      %239 = vmatprep.subr.mxu0 0.0
      %240 = vmatpush2.msra.mxu0 0.0
      %241 = vmatprep.subr.mxu0 0.0
      %242 = vmatpush2.msra.mxu0 0.0
      %243 = vmatprep.subr.mxu0 0.0
      %244 = vmatpush2.msra.mxu0 0.0
      %245 = vmatprep.subr.mxu0 0.0
      %246 = vmatpush2.msra.mxu0 0.0
      %247 = vmatprep.subr.mxu0 0.0
      %248 = vmatpush2.msra.mxu0 0.0
      %249 = vmatprep.subr.mxu0 0.0
      %250 = vmatpush2.msra.mxu0 0.0
      %251 = vmatprep.subr.mxu0 0.0
      %252 = vmatpush2.msra.mxu0 0.0
      %253 = vmatprep.subr.mxu0 0.0
      %254 = vmatpush2.msra.mxu0 0.0
      %255 = vmatprep.mubr.f32.mxu0 0.0
      %256 = vmatmul.mubr.f32.gmra.mxu0 %v186
      %v257 = vpop.f32.mrf.mxu0
      %v258 = vadd.f32 0.0, %v257
      %v259 = vpop.f32.mrf.mxu0
      %260 = vmatprep.mubr.f32.mxu0 0.0
      %261 = vmatmul.mubr.f32.gmra.mxu0 %v189
      %v262 = vpop.f32.mrf.mxu0
      %v263 = vadd.f32 0.0, %v262
      %v264 = vpop.f32.mrf.mxu0
      %265 = vdwg.mxu0
      %v266 = vlaneseq
      %v267 = vshrl.u32 %v266, 7
      %v268 = vsub.s32 0, %v267
      %v269 = vrot.slane %v179, %v268
      %vm270 = vcmask 31744
      %v272 = vsel %vm270, %v258, 0
      %v275 = vsel %vm270, %v263, 0
      %vm277 = vcmask 1043456
      %v279 = vsel %vm277, %v178, 0
      %281 = vmatprep.subr.mxu0 0.0
      %282 = vmatpush1.msra.mxu0 0.0
      %283 = vmatprep.subr.mxu0 0.0
      %284 = vmatpush1.msra.mxu0 0.0
      %285 = vmatprep.subr.mxu0 0.0
      %286 = vmatpush1.msra.mxu0 0.0
      %287 = vmatprep.subr.mxu0 0.0
      %288 = vmatpush1.msra.mxu0 0.0
      %289 = vmatprep.subr.mxu0 0.0
      %290 = vmatpush1.msra.mxu0 0.0
      %291 = vmatprep.subr.mxu0 0.0
      %292 = vmatpush1.msra.mxu0 0.0
      %293 = vmatprep.subr.mxu0 0.0
      %294 = vmatpush1.msra.mxu0 0.0
      %295 = vmatprep.subr.mxu0 0.0
      %296 = vmatpush1.msra.mxu0 0.0
      %297 = vmatprep.subr.mxu0 0.0
      %298 = vmatpush1.msra.mxu0 0.0
      %299 = vmatprep.subr.mxu0 0.0
      %300 = vmatpush1.msra.mxu0 0.0
      %301 = vmatprep.subr.mxu0 0.0
      %302 = vmatpush1.msra.mxu0 0.0
      %303 = vmatprep.subr.mxu0 0.0
      %304 = vmatpush1.msra.mxu0 0.0
      %305 = vmatprep.subr.mxu0 0.0
      %306 = vmatpush1.msra.mxu0 0.0
      %307 = vmatprep.subr.mxu0 0.0
      %308 = vmatpush1.msra.mxu0 0.0
      %309 = vmatprep.subr.mxu0 0.0
      %310 = vmatpush1.msra.mxu0 0.0
      %311 = vmatprep.subr.mxu0 0.0
      %312 = vmatpush1.msra.mxu0 %v279
      %313 = vmatprep.subr.mxu0 0.0
      %314 = vmatpush2.msra.mxu0 0.0
      %315 = vmatprep.subr.mxu0 0.0
      %316 = vmatpush2.msra.mxu0 0.0
      %317 = vmatprep.subr.mxu0 0.0
      %318 = vmatpush2.msra.mxu0 0.0
      %319 = vmatprep.subr.mxu0 0.0
      %320 = vmatpush2.msra.mxu0 0.0
      %321 = vmatprep.subr.mxu0 0.0
      %322 = vmatpush2.msra.mxu0 0.0
      %323 = vmatprep.subr.mxu0 0.0
      %324 = vmatpush2.msra.mxu0 0.0
      %325 = vmatprep.subr.mxu0 0.0
      %326 = vmatpush2.msra.mxu0 0.0
      %327 = vmatprep.subr.mxu0 0.0
      %328 = vmatpush2.msra.mxu0 0.0
      %329 = vmatprep.subr.mxu0 0.0
      %330 = vmatpush2.msra.mxu0 0.0
      %331 = vmatprep.subr.mxu0 0.0
      %332 = vmatpush2.msra.mxu0 0.0
      %333 = vmatprep.subr.mxu0 0.0
      %334 = vmatpush2.msra.mxu0 0.0
      %335 = vmatprep.subr.mxu0 0.0
      %336 = vmatpush2.msra.mxu0 0.0
      %337 = vmatprep.subr.mxu0 0.0
      %338 = vmatpush2.msra.mxu0 0.0
      %339 = vmatprep.subr.mxu0 0.0
      %340 = vmatpush2.msra.mxu0 0.0
      %341 = vmatprep.subr.mxu0 0.0
      %342 = vmatpush2.msra.mxu0 0.0
      %343 = vmatprep.subr.mxu0 0.0
      %344 = vmatpush2.msra.mxu0 0.0
      %345 = vmatprep.mubr.f32.mxu0 0.0
      %346 = vmatmul.mubr.f32.gmra.mxu0 %v272
      %v347 = vpop.f32.mrf.mxu0
      %v348 = vadd.f32 %v269, %v347
      %v349 = vpop.f32.mrf.mxu0
      %350 = vmatprep.mubr.f32.mxu0 0.0
      %351 = vmatmul.mubr.f32.gmra.mxu0 %v275
      %v352 = vpop.f32.mrf.mxu0
      %v353 = vadd.f32 %v269, %v352
      %v354 = vpop.f32.mrf.mxu0
      %355 = vdwg.mxu0
      %v356 = vmax.f32 %v348, 0.0
      %v357 = vmax.f32 %v353, 0.0
      %v358 = vlaneseq
      %v359 = vshrl.u32 %v358, 7
      %v360 = vsub.s32 0, %v359
      %v361 = vrot.slane %v180, %v360
      %v362 = vmul.f32 %v356, %v361
      %v363 = vmul.f32 %v357, %v361
      %vm364 = vcmask 261120
      %v365 = vsel %vm364, %v362, 0.0
      %366 = vadd.xlane.f32.xlu0 %v365
      %v367 = vpop.xlane.xlu0 %366
      %v368 = vsel %vm364, %v363, 0.0
      %369 = vadd.xlane.f32.xlu0 %v368
      %v370 = vpop.xlane.xlu0 %369
      %s371 = scalar_lea.vmem %s169, 16
      %v372 = vld [vmem:[%s371] sm:$0xff]
      %v373 = vld [vmem:[%s371 + $0x8] sm:$0xff]
      %374 = vmatprep.subr.mxu0 0.0
      %375 = vmatpush1.msra.mxu0 0.0
      %376 = vmatprep.subr.mxu0 0.0
      %377 = vmatpush1.msra.mxu0 0.0
      %378 = vmatprep.subr.mxu0 0.0
      %379 = vmatpush1.msra.mxu0 0.0
      %380 = vmatprep.subr.mxu0 0.0
      %381 = vmatpush1.msra.mxu0 0.0
      %382 = vmatprep.subr.mxu0 0.0
      %383 = vmatpush1.msra.mxu0 0.0
      %384 = vmatprep.subr.mxu0 0.0
      %385 = vmatpush1.msra.mxu0 0.0
      %386 = vmatprep.subr.mxu0 0.0
      %387 = vmatpush1.msra.mxu0 0.0
      %388 = vmatprep.subr.mxu0 0.0
      %389 = vmatpush1.msra.mxu0 0.0
      %390 = vmatprep.subr.mxu0 0.0
      %391 = vmatpush1.msra.mxu0 0.0
      %392 = vmatprep.subr.mxu0 0.0
      %393 = vmatpush1.msra.mxu0 0.0
      %394 = vmatprep.subr.mxu0 0.0
      %395 = vmatpush1.msra.mxu0 0.0
      %396 = vmatprep.subr.mxu0 0.0
      %397 = vmatpush1.msra.mxu0 0.0
      %398 = vmatprep.subr.mxu0 0.0
      %399 = vmatpush1.msra.mxu0 0.0
      %400 = vmatprep.subr.mxu0 0.0
      %401 = vmatpush1.msra.mxu0 0.0
      %402 = vmatprep.subr.mxu0 0.0
      %403 = vmatpush1.msra.mxu0 %v373
      %404 = vmatprep.subr.mxu0 0.0
      %405 = vmatpush1.msra.mxu0 %v372
      %406 = vmatprep.subr.mxu0 0.0
      %407 = vmatpush2.msra.mxu0 0.0
      %408 = vmatprep.subr.mxu0 0.0
      %409 = vmatpush2.msra.mxu0 0.0
      %410 = vmatprep.subr.mxu0 0.0
      %411 = vmatpush2.msra.mxu0 0.0
      %412 = vmatprep.subr.mxu0 0.0
      %413 = vmatpush2.msra.mxu0 0.0
      %414 = vmatprep.subr.mxu0 0.0
      %415 = vmatpush2.msra.mxu0 0.0
      %416 = vmatprep.subr.mxu0 0.0
      %417 = vmatpush2.msra.mxu0 0.0
      %418 = vmatprep.subr.mxu0 0.0
      %419 = vmatpush2.msra.mxu0 0.0
      %420 = vmatprep.subr.mxu0 0.0
      %421 = vmatpush2.msra.mxu0 0.0
      %422 = vmatprep.subr.mxu0 0.0
      %423 = vmatpush2.msra.mxu0 0.0
      %424 = vmatprep.subr.mxu0 0.0
      %425 = vmatpush2.msra.mxu0 0.0
      %426 = vmatprep.subr.mxu0 0.0
      %427 = vmatpush2.msra.mxu0 0.0
      %428 = vmatprep.subr.mxu0 0.0
      %429 = vmatpush2.msra.mxu0 0.0
      %430 = vmatprep.subr.mxu0 0.0
      %431 = vmatpush2.msra.mxu0 0.0
      %432 = vmatprep.subr.mxu0 0.0
      %433 = vmatpush2.msra.mxu0 0.0
      %434 = vmatprep.subr.mxu0 0.0
      %435 = vmatpush2.msra.mxu0 0.0
      %436 = vmatprep.subr.mxu0 0.0
      %437 = vmatpush2.msra.mxu0 0.0
      %438 = vmatprep.mubr.f32.mxu0 0.0
      %439 = vmatmul.mubr.f32.gmra.mxu0 %v186
      %v440 = vpop.f32.mrf.mxu0
      %v441 = vadd.f32 0.0, %v440
      %v442 = vpop.f32.mrf.mxu0
      %443 = vmatprep.mubr.f32.mxu0 0.0
      %444 = vmatmul.mubr.f32.gmra.mxu0 %v189
      %v445 = vpop.f32.mrf.mxu0
      %v446 = vadd.f32 0.0, %v445
      %v447 = vpop.f32.mrf.mxu0
      %448 = vdwg.mxu0
      %v450 = vsel %vm270, %v441, 0
      %v453 = vsel %vm270, %v446, 0
      %455 = vmatprep.subr.mxu0 0.0
      %456 = vmatpush1.msra.mxu0 0.0
      %457 = vmatprep.subr.mxu0 0.0
      %458 = vmatpush1.msra.mxu0 0.0
      %459 = vmatprep.subr.mxu0 0.0
      %460 = vmatpush1.msra.mxu0 0.0
      %461 = vmatprep.subr.mxu0 0.0
      %462 = vmatpush1.msra.mxu0 0.0
      %463 = vmatprep.subr.mxu0 0.0
      %464 = vmatpush1.msra.mxu0 0.0
      %465 = vmatprep.subr.mxu0 0.0
      %466 = vmatpush1.msra.mxu0 0.0
      %467 = vmatprep.subr.mxu0 0.0
      %468 = vmatpush1.msra.mxu0 0.0
      %469 = vmatprep.subr.mxu0 0.0
      %470 = vmatpush1.msra.mxu0 0.0
      %471 = vmatprep.subr.mxu0 0.0
      %472 = vmatpush1.msra.mxu0 0.0
      %473 = vmatprep.subr.mxu0 0.0
      %474 = vmatpush1.msra.mxu0 0.0
      %475 = vmatprep.subr.mxu0 0.0
      %476 = vmatpush1.msra.mxu0 0.0
      %477 = vmatprep.subr.mxu0 0.0
      %478 = vmatpush1.msra.mxu0 0.0
      %479 = vmatprep.subr.mxu0 0.0
      %480 = vmatpush1.msra.mxu0 0.0
      %481 = vmatprep.subr.mxu0 0.0
      %482 = vmatpush1.msra.mxu0 0.0
      %483 = vmatprep.subr.mxu0 0.0
      %484 = vmatpush1.msra.mxu0 0.0
      %485 = vmatprep.subr.mxu0 0.0
      %486 = vmatpush1.msra.mxu0 %v279
      %487 = vmatprep.subr.mxu0 0.0
      %488 = vmatpush2.msra.mxu0 0.0
      %489 = vmatprep.subr.mxu0 0.0
      %490 = vmatpush2.msra.mxu0 0.0
      %491 = vmatprep.subr.mxu0 0.0
      %492 = vmatpush2.msra.mxu0 0.0
      %493 = vmatprep.subr.mxu0 0.0
      %494 = vmatpush2.msra.mxu0 0.0
      %495 = vmatprep.subr.mxu0 0.0
      %496 = vmatpush2.msra.mxu0 0.0
      %497 = vmatprep.subr.mxu0 0.0
      %498 = vmatpush2.msra.mxu0 0.0
      %499 = vmatprep.subr.mxu0 0.0
      %500 = vmatpush2.msra.mxu0 0.0
      %501 = vmatprep.subr.mxu0 0.0
      %502 = vmatpush2.msra.mxu0 0.0
      %503 = vmatprep.subr.mxu0 0.0
      %504 = vmatpush2.msra.mxu0 0.0
      %505 = vmatprep.subr.mxu0 0.0
      %506 = vmatpush2.msra.mxu0 0.0
      %507 = vmatprep.subr.mxu0 0.0
      %508 = vmatpush2.msra.mxu0 0.0
      %509 = vmatprep.subr.mxu0 0.0
      %510 = vmatpush2.msra.mxu0 0.0
      %511 = vmatprep.subr.mxu0 0.0
      %512 = vmatpush2.msra.mxu0 0.0
      %513 = vmatprep.subr.mxu0 0.0
      %514 = vmatpush2.msra.mxu0 0.0
      %515 = vmatprep.subr.mxu0 0.0
      %516 = vmatpush2.msra.mxu0 0.0
      %517 = vmatprep.subr.mxu0 0.0
      %518 = vmatpush2.msra.mxu0 0.0
      %519 = vmatprep.mubr.f32.mxu0 0.0
      %520 = vmatmul.mubr.f32.gmra.mxu0 %v450
      %v521 = vpop.f32.mrf.mxu0
      %v522 = vadd.f32 %v269, %v521
      %v523 = vpop.f32.mrf.mxu0
      %524 = vmatprep.mubr.f32.mxu0 0.0
      %525 = vmatmul.mubr.f32.gmra.mxu0 %v453
      %v526 = vpop.f32.mrf.mxu0
      %v527 = vadd.f32 %v269, %v526
      %v528 = vpop.f32.mrf.mxu0
      %529 = vdwg.mxu0
      %v530 = vmax.f32 %v522, 0.0
      %v531 = vmax.f32 %v527, 0.0
      %v532 = vmul.f32 %v530, %v361
      %v533 = vmul.f32 %v531, %v361
      %v534 = vsel %vm364, %v532, 0.0
      %535 = vadd.xlane.f32.xlu0 %v534
      %v536 = vpop.xlane.xlu0 %535
      %v537 = vsel %vm364, %v533, 0.0
      %538 = vadd.xlane.f32.xlu0 %v537
      %v539 = vpop.xlane.xlu0 %538
      %s540 = scalar_lea.vmem %s169, 32
      %v541 = vld [vmem:[%s540] sm:$0xff]
      %v542 = vld [vmem:[%s540 + $0x8] sm:$0xff]
      %543 = vmatprep.subr.mxu0 0.0
      %544 = vmatpush1.msra.mxu0 0.0
      %545 = vmatprep.subr.mxu0 0.0
      %546 = vmatpush1.msra.mxu0 0.0
      %547 = vmatprep.subr.mxu0 0.0
      %548 = vmatpush1.msra.mxu0 0.0
      %549 = vmatprep.subr.mxu0 0.0
      %550 = vmatpush1.msra.mxu0 0.0
      %551 = vmatprep.subr.mxu0 0.0
      %552 = vmatpush1.msra.mxu0 0.0
      %553 = vmatprep.subr.mxu0 0.0
      %554 = vmatpush1.msra.mxu0 0.0
      %555 = vmatprep.subr.mxu0 0.0
      %556 = vmatpush1.msra.mxu0 0.0
      %557 = vmatprep.subr.mxu0 0.0
      %558 = vmatpush1.msra.mxu0 0.0
      %559 = vmatprep.subr.mxu0 0.0
      %560 = vmatpush1.msra.mxu0 0.0
      %561 = vmatprep.subr.mxu0 0.0
      %562 = vmatpush1.msra.mxu0 0.0
      %563 = vmatprep.subr.mxu0 0.0
      %564 = vmatpush1.msra.mxu0 0.0
      %565 = vmatprep.subr.mxu0 0.0
      %566 = vmatpush1.msra.mxu0 0.0
      %567 = vmatprep.subr.mxu0 0.0
      %568 = vmatpush1.msra.mxu0 0.0
      %569 = vmatprep.subr.mxu0 0.0
      %570 = vmatpush1.msra.mxu0 0.0
      %571 = vmatprep.subr.mxu0 0.0
      %572 = vmatpush1.msra.mxu0 %v542
      %573 = vmatprep.subr.mxu0 0.0
      %574 = vmatpush1.msra.mxu0 %v541
      %575 = vmatprep.subr.mxu0 0.0
      %576 = vmatpush2.msra.mxu0 0.0
      %577 = vmatprep.subr.mxu0 0.0
      %578 = vmatpush2.msra.mxu0 0.0
      %579 = vmatprep.subr.mxu0 0.0
      %580 = vmatpush2.msra.mxu0 0.0
      %581 = vmatprep.subr.mxu0 0.0
      %582 = vmatpush2.msra.mxu0 0.0
      %583 = vmatprep.subr.mxu0 0.0
      %584 = vmatpush2.msra.mxu0 0.0
      %585 = vmatprep.subr.mxu0 0.0
      %586 = vmatpush2.msra.mxu0 0.0
      %587 = vmatprep.subr.mxu0 0.0
      %588 = vmatpush2.msra.mxu0 0.0
      %589 = vmatprep.subr.mxu0 0.0
      %590 = vmatpush2.msra.mxu0 0.0
      %591 = vmatprep.subr.mxu0 0.0
      %592 = vmatpush2.msra.mxu0 0.0
      %593 = vmatprep.subr.mxu0 0.0
      %594 = vmatpush2.msra.mxu0 0.0
      %595 = vmatprep.subr.mxu0 0.0
      %596 = vmatpush2.msra.mxu0 0.0
      %597 = vmatprep.subr.mxu0 0.0
      %598 = vmatpush2.msra.mxu0 0.0
      %599 = vmatprep.subr.mxu0 0.0
      %600 = vmatpush2.msra.mxu0 0.0
      %601 = vmatprep.subr.mxu0 0.0
      %602 = vmatpush2.msra.mxu0 0.0
      %603 = vmatprep.subr.mxu0 0.0
      %604 = vmatpush2.msra.mxu0 0.0
      %605 = vmatprep.subr.mxu0 0.0
      %606 = vmatpush2.msra.mxu0 0.0
      %607 = vmatprep.mubr.f32.mxu0 0.0
      %608 = vmatmul.mubr.f32.gmra.mxu0 %v186
      %v609 = vpop.f32.mrf.mxu0
      %v610 = vadd.f32 0.0, %v609
      %v611 = vpop.f32.mrf.mxu0
      %612 = vmatprep.mubr.f32.mxu0 0.0
      %613 = vmatmul.mubr.f32.gmra.mxu0 %v189
      %v614 = vpop.f32.mrf.mxu0
      %v615 = vadd.f32 0.0, %v614
      %v616 = vpop.f32.mrf.mxu0
      %617 = vdwg.mxu0
      %v619 = vsel %vm270, %v610, 0
      %v622 = vsel %vm270, %v615, 0
      %624 = vmatprep.subr.mxu0 0.0
      %625 = vmatpush1.msra.mxu0 0.0
      %626 = vmatprep.subr.mxu0 0.0
      %627 = vmatpush1.msra.mxu0 0.0
      %628 = vmatprep.subr.mxu0 0.0
      %629 = vmatpush1.msra.mxu0 0.0
      %630 = vmatprep.subr.mxu0 0.0
      %631 = vmatpush1.msra.mxu0 0.0
      %632 = vmatprep.subr.mxu0 0.0
      %633 = vmatpush1.msra.mxu0 0.0
      %634 = vmatprep.subr.mxu0 0.0
      %635 = vmatpush1.msra.mxu0 0.0
      %636 = vmatprep.subr.mxu0 0.0
      %637 = vmatpush1.msra.mxu0 0.0
      %638 = vmatprep.subr.mxu0 0.0
      %639 = vmatpush1.msra.mxu0 0.0
      %640 = vmatprep.subr.mxu0 0.0
      %641 = vmatpush1.msra.mxu0 0.0
      %642 = vmatprep.subr.mxu0 0.0
      %643 = vmatpush1.msra.mxu0 0.0
      %644 = vmatprep.subr.mxu0 0.0
      %645 = vmatpush1.msra.mxu0 0.0
      %646 = vmatprep.subr.mxu0 0.0
      %647 = vmatpush1.msra.mxu0 0.0
      %648 = vmatprep.subr.mxu0 0.0
      %649 = vmatpush1.msra.mxu0 0.0
      %650 = vmatprep.subr.mxu0 0.0
      %651 = vmatpush1.msra.mxu0 0.0
      %652 = vmatprep.subr.mxu0 0.0
      %653 = vmatpush1.msra.mxu0 0.0
      %654 = vmatprep.subr.mxu0 0.0
      %655 = vmatpush1.msra.mxu0 %v279
      %656 = vmatprep.subr.mxu0 0.0
      %657 = vmatpush2.msra.mxu0 0.0
      %658 = vmatprep.subr.mxu0 0.0
      %659 = vmatpush2.msra.mxu0 0.0
      %660 = vmatprep.subr.mxu0 0.0
      %661 = vmatpush2.msra.mxu0 0.0
      %662 = vmatprep.subr.mxu0 0.0
      %663 = vmatpush2.msra.mxu0 0.0
      %664 = vmatprep.subr.mxu0 0.0
      %665 = vmatpush2.msra.mxu0 0.0
      %666 = vmatprep.subr.mxu0 0.0
      %667 = vmatpush2.msra.mxu0 0.0
      %668 = vmatprep.subr.mxu0 0.0
      %669 = vmatpush2.msra.mxu0 0.0
      %670 = vmatprep.subr.mxu0 0.0
      %671 = vmatpush2.msra.mxu0 0.0
      %672 = vmatprep.subr.mxu0 0.0
      %673 = vmatpush2.msra.mxu0 0.0
      %674 = vmatprep.subr.mxu0 0.0
      %675 = vmatpush2.msra.mxu0 0.0
      %676 = vmatprep.subr.mxu0 0.0
      %677 = vmatpush2.msra.mxu0 0.0
      %678 = vmatprep.subr.mxu0 0.0
      %679 = vmatpush2.msra.mxu0 0.0
      %680 = vmatprep.subr.mxu0 0.0
      %681 = vmatpush2.msra.mxu0 0.0
      %682 = vmatprep.subr.mxu0 0.0
      %683 = vmatpush2.msra.mxu0 0.0
      %684 = vmatprep.subr.mxu0 0.0
      %685 = vmatpush2.msra.mxu0 0.0
      %686 = vmatprep.subr.mxu0 0.0
      %687 = vmatpush2.msra.mxu0 0.0
      %688 = vmatprep.mubr.f32.mxu0 0.0
      %689 = vmatmul.mubr.f32.gmra.mxu0 %v619
      %v690 = vpop.f32.mrf.mxu0
      %v691 = vadd.f32 %v269, %v690
      %v692 = vpop.f32.mrf.mxu0
      %693 = vmatprep.mubr.f32.mxu0 0.0
      %694 = vmatmul.mubr.f32.gmra.mxu0 %v622
      %v695 = vpop.f32.mrf.mxu0
      %v696 = vadd.f32 %v269, %v695
      %v697 = vpop.f32.mrf.mxu0
      %698 = vdwg.mxu0
      %v699 = vmax.f32 %v691, 0.0
      %v700 = vmax.f32 %v696, 0.0
      %v701 = vmul.f32 %v699, %v361
      %v702 = vmul.f32 %v700, %v361
      %v703 = vsel %vm364, %v701, 0.0
      %704 = vadd.xlane.f32.xlu0 %v703
      %v705 = vpop.xlane.xlu0 %704
      %v706 = vsel %vm364, %v702, 0.0
      %707 = vadd.xlane.f32.xlu0 %v706
      %v708 = vpop.xlane.xlu0 %707
      %s709 = scalar_lea.vmem %s169, 48
      %v710 = vld [vmem:[%s709] sm:$0xff]
      %v711 = vld [vmem:[%s709 + $0x8] sm:$0xff]
      %712 = vmatprep.subr.mxu0 0.0
      %713 = vmatpush1.msra.mxu0 0.0
      %714 = vmatprep.subr.mxu0 0.0
      %715 = vmatpush1.msra.mxu0 0.0
      %716 = vmatprep.subr.mxu0 0.0
      %717 = vmatpush1.msra.mxu0 0.0
      %718 = vmatprep.subr.mxu0 0.0
      %719 = vmatpush1.msra.mxu0 0.0
      %720 = vmatprep.subr.mxu0 0.0
      %721 = vmatpush1.msra.mxu0 0.0
      %722 = vmatprep.subr.mxu0 0.0
      %723 = vmatpush1.msra.mxu0 0.0
      %724 = vmatprep.subr.mxu0 0.0
      %725 = vmatpush1.msra.mxu0 0.0
      %726 = vmatprep.subr.mxu0 0.0
      %727 = vmatpush1.msra.mxu0 0.0
      %728 = vmatprep.subr.mxu0 0.0
      %729 = vmatpush1.msra.mxu0 0.0
      %730 = vmatprep.subr.mxu0 0.0
      %731 = vmatpush1.msra.mxu0 0.0
      %732 = vmatprep.subr.mxu0 0.0
      %733 = vmatpush1.msra.mxu0 0.0
      %734 = vmatprep.subr.mxu0 0.0
      %735 = vmatpush1.msra.mxu0 0.0
      %736 = vmatprep.subr.mxu0 0.0
      %737 = vmatpush1.msra.mxu0 0.0
      %738 = vmatprep.subr.mxu0 0.0
      %739 = vmatpush1.msra.mxu0 0.0
      %740 = vmatprep.subr.mxu0 0.0
      %741 = vmatpush1.msra.mxu0 %v711
      %742 = vmatprep.subr.mxu0 0.0
      %743 = vmatpush1.msra.mxu0 %v710
      %744 = vmatprep.subr.mxu0 0.0
      %745 = vmatpush2.msra.mxu0 0.0
      %746 = vmatprep.subr.mxu0 0.0
      %747 = vmatpush2.msra.mxu0 0.0
      %748 = vmatprep.subr.mxu0 0.0
      %749 = vmatpush2.msra.mxu0 0.0
      %750 = vmatprep.subr.mxu0 0.0
      %751 = vmatpush2.msra.mxu0 0.0
      %752 = vmatprep.subr.mxu0 0.0
      %753 = vmatpush2.msra.mxu0 0.0
      %754 = vmatprep.subr.mxu0 0.0
      %755 = vmatpush2.msra.mxu0 0.0
      %756 = vmatprep.subr.mxu0 0.0
      %757 = vmatpush2.msra.mxu0 0.0
      %758 = vmatprep.subr.mxu0 0.0
      %759 = vmatpush2.msra.mxu0 0.0
      %760 = vmatprep.subr.mxu0 0.0
      %761 = vmatpush2.msra.mxu0 0.0
      %762 = vmatprep.subr.mxu0 0.0
      %763 = vmatpush2.msra.mxu0 0.0
      %764 = vmatprep.subr.mxu0 0.0
      %765 = vmatpush2.msra.mxu0 0.0
      %766 = vmatprep.subr.mxu0 0.0
      %767 = vmatpush2.msra.mxu0 0.0
      %768 = vmatprep.subr.mxu0 0.0
      %769 = vmatpush2.msra.mxu0 0.0
      %770 = vmatprep.subr.mxu0 0.0
      %771 = vmatpush2.msra.mxu0 0.0
      %772 = vmatprep.subr.mxu0 0.0
      %773 = vmatpush2.msra.mxu0 0.0
      %774 = vmatprep.subr.mxu0 0.0
      %775 = vmatpush2.msra.mxu0 0.0
      %776 = vmatprep.mubr.f32.mxu0 0.0
      %777 = vmatmul.mubr.f32.gmra.mxu0 %v186
      %v778 = vpop.f32.mrf.mxu0
      %v779 = vadd.f32 0.0, %v778
      %v780 = vpop.f32.mrf.mxu0
      %781 = vmatprep.mubr.f32.mxu0 0.0
      %782 = vmatmul.mubr.f32.gmra.mxu0 %v189
      %v783 = vpop.f32.mrf.mxu0
      %v784 = vadd.f32 0.0, %v783
      %v785 = vpop.f32.mrf.mxu0
      %786 = vdwg.mxu0
      %v788 = vsel %vm270, %v779, 0
      %v791 = vsel %vm270, %v784, 0
      %793 = vmatprep.subr.mxu0 0.0
      %794 = vmatpush1.msra.mxu0 0.0
      %795 = vmatprep.subr.mxu0 0.0
      %796 = vmatpush1.msra.mxu0 0.0
      %797 = vmatprep.subr.mxu0 0.0
      %798 = vmatpush1.msra.mxu0 0.0
      %799 = vmatprep.subr.mxu0 0.0
      %800 = vmatpush1.msra.mxu0 0.0
      %801 = vmatprep.subr.mxu0 0.0
      %802 = vmatpush1.msra.mxu0 0.0
      %803 = vmatprep.subr.mxu0 0.0
      %804 = vmatpush1.msra.mxu0 0.0
      %805 = vmatprep.subr.mxu0 0.0
      %806 = vmatpush1.msra.mxu0 0.0
      %807 = vmatprep.subr.mxu0 0.0
      %808 = vmatpush1.msra.mxu0 0.0
      %809 = vmatprep.subr.mxu0 0.0
      %810 = vmatpush1.msra.mxu0 0.0
      %811 = vmatprep.subr.mxu0 0.0
      %812 = vmatpush1.msra.mxu0 0.0
      %813 = vmatprep.subr.mxu0 0.0
      %814 = vmatpush1.msra.mxu0 0.0
      %815 = vmatprep.subr.mxu0 0.0
      %816 = vmatpush1.msra.mxu0 0.0
      %817 = vmatprep.subr.mxu0 0.0
      %818 = vmatpush1.msra.mxu0 0.0
      %819 = vmatprep.subr.mxu0 0.0
      %820 = vmatpush1.msra.mxu0 0.0
      %821 = vmatprep.subr.mxu0 0.0
      %822 = vmatpush1.msra.mxu0 0.0
      %823 = vmatprep.subr.mxu0 0.0
      %824 = vmatpush1.msra.mxu0 %v279
      %825 = vmatprep.subr.mxu0 0.0
      %826 = vmatpush2.msra.mxu0 0.0
      %827 = vmatprep.subr.mxu0 0.0
      %828 = vmatpush2.msra.mxu0 0.0
      %829 = vmatprep.subr.mxu0 0.0
      %830 = vmatpush2.msra.mxu0 0.0
      %831 = vmatprep.subr.mxu0 0.0
      %832 = vmatpush2.msra.mxu0 0.0
      %833 = vmatprep.subr.mxu0 0.0
      %834 = vmatpush2.msra.mxu0 0.0
      %835 = vmatprep.subr.mxu0 0.0
      %836 = vmatpush2.msra.mxu0 0.0
      %837 = vmatprep.subr.mxu0 0.0
      %838 = vmatpush2.msra.mxu0 0.0
      %839 = vmatprep.subr.mxu0 0.0
      %840 = vmatpush2.msra.mxu0 0.0
      %841 = vmatprep.subr.mxu0 0.0
      %842 = vmatpush2.msra.mxu0 0.0
      %843 = vmatprep.subr.mxu0 0.0
      %844 = vmatpush2.msra.mxu0 0.0
      %845 = vmatprep.subr.mxu0 0.0
      %846 = vmatpush2.msra.mxu0 0.0
      %847 = vmatprep.subr.mxu0 0.0
      %848 = vmatpush2.msra.mxu0 0.0
      %849 = vmatprep.subr.mxu0 0.0
      %850 = vmatpush2.msra.mxu0 0.0
      %851 = vmatprep.subr.mxu0 0.0
      %852 = vmatpush2.msra.mxu0 0.0
      %853 = vmatprep.subr.mxu0 0.0
      %854 = vmatpush2.msra.mxu0 0.0
      %855 = vmatprep.subr.mxu0 0.0
      %856 = vmatpush2.msra.mxu0 0.0
      %857 = vmatprep.mubr.f32.mxu0 0.0
      %858 = vmatmul.mubr.f32.gmra.mxu0 %v788
      %v859 = vpop.f32.mrf.mxu0
      %v860 = vadd.f32 %v269, %v859
      %v861 = vpop.f32.mrf.mxu0
      %862 = vmatprep.mubr.f32.mxu0 0.0
      %863 = vmatmul.mubr.f32.gmra.mxu0 %v791
      %v864 = vpop.f32.mrf.mxu0
      %v865 = vadd.f32 %v269, %v864
      %v866 = vpop.f32.mrf.mxu0
      %867 = vdwg.mxu0
      %v868 = vmax.f32 %v860, 0.0
      %v869 = vmax.f32 %v865, 0.0
      %v870 = vmul.f32 %v868, %v361
      %v871 = vmul.f32 %v869, %v361
      %v872 = vsel %vm364, %v870, 0.0
      %873 = vadd.xlane.f32.xlu0 %v872
      %v874 = vpop.xlane.xlu0 %873
      %v875 = vsel %vm364, %v871, 0.0
      %876 = vadd.xlane.f32.xlu0 %v875
      %v877 = vpop.xlane.xlu0 %876
      %s878 = scalar_lea.vmem %s169, 64
      %v879 = vld [vmem:[%s878] sm:$0xff]
      %v880 = vld [vmem:[%s878 + $0x8] sm:$0xff]
      %881 = vmatprep.subr.mxu0 0.0
      %882 = vmatpush1.msra.mxu0 0.0
      %883 = vmatprep.subr.mxu0 0.0
      %884 = vmatpush1.msra.mxu0 0.0
      %885 = vmatprep.subr.mxu0 0.0
      %886 = vmatpush1.msra.mxu0 0.0
      %887 = vmatprep.subr.mxu0 0.0
      %888 = vmatpush1.msra.mxu0 0.0
      %889 = vmatprep.subr.mxu0 0.0
      %890 = vmatpush1.msra.mxu0 0.0
      %891 = vmatprep.subr.mxu0 0.0
      %892 = vmatpush1.msra.mxu0 0.0
      %893 = vmatprep.subr.mxu0 0.0
      %894 = vmatpush1.msra.mxu0 0.0
      %895 = vmatprep.subr.mxu0 0.0
      %896 = vmatpush1.msra.mxu0 0.0
      %897 = vmatprep.subr.mxu0 0.0
      %898 = vmatpush1.msra.mxu0 0.0
      %899 = vmatprep.subr.mxu0 0.0
      %900 = vmatpush1.msra.mxu0 0.0
      %901 = vmatprep.subr.mxu0 0.0
      %902 = vmatpush1.msra.mxu0 0.0
      %903 = vmatprep.subr.mxu0 0.0
      %904 = vmatpush1.msra.mxu0 0.0
      %905 = vmatprep.subr.mxu0 0.0
      %906 = vmatpush1.msra.mxu0 0.0
      %907 = vmatprep.subr.mxu0 0.0
      %908 = vmatpush1.msra.mxu0 0.0
      %909 = vmatprep.subr.mxu0 0.0
      %910 = vmatpush1.msra.mxu0 %v880
      %911 = vmatprep.subr.mxu0 0.0
      %912 = vmatpush1.msra.mxu0 %v879
      %913 = vmatprep.subr.mxu0 0.0
      %914 = vmatpush2.msra.mxu0 0.0
      %915 = vmatprep.subr.mxu0 0.0
      %916 = vmatpush2.msra.mxu0 0.0
      %917 = vmatprep.subr.mxu0 0.0
      %918 = vmatpush2.msra.mxu0 0.0
      %919 = vmatprep.subr.mxu0 0.0
      %920 = vmatpush2.msra.mxu0 0.0
      %921 = vmatprep.subr.mxu0 0.0
      %922 = vmatpush2.msra.mxu0 0.0
      %923 = vmatprep.subr.mxu0 0.0
      %924 = vmatpush2.msra.mxu0 0.0
      %925 = vmatprep.subr.mxu0 0.0
      %926 = vmatpush2.msra.mxu0 0.0
      %927 = vmatprep.subr.mxu0 0.0
      %928 = vmatpush2.msra.mxu0 0.0
      %929 = vmatprep.subr.mxu0 0.0
      %930 = vmatpush2.msra.mxu0 0.0
      %931 = vmatprep.subr.mxu0 0.0
      %932 = vmatpush2.msra.mxu0 0.0
      %933 = vmatprep.subr.mxu0 0.0
      %934 = vmatpush2.msra.mxu0 0.0
      %935 = vmatprep.subr.mxu0 0.0
      %936 = vmatpush2.msra.mxu0 0.0
      %937 = vmatprep.subr.mxu0 0.0
      %938 = vmatpush2.msra.mxu0 0.0
      %939 = vmatprep.subr.mxu0 0.0
      %940 = vmatpush2.msra.mxu0 0.0
      %941 = vmatprep.subr.mxu0 0.0
      %942 = vmatpush2.msra.mxu0 0.0
      %943 = vmatprep.subr.mxu0 0.0
      %944 = vmatpush2.msra.mxu0 0.0
      %945 = vmatprep.mubr.f32.mxu0 0.0
      %946 = vmatmul.mubr.f32.gmra.mxu0 %v186
      %v947 = vpop.f32.mrf.mxu0
      %v948 = vadd.f32 0.0, %v947
      %v949 = vpop.f32.mrf.mxu0
      %950 = vmatprep.mubr.f32.mxu0 0.0
      %951 = vmatmul.mubr.f32.gmra.mxu0 %v189
      %v952 = vpop.f32.mrf.mxu0
      %v953 = vadd.f32 0.0, %v952
      %v954 = vpop.f32.mrf.mxu0
      %955 = vdwg.mxu0
      %v957 = vsel %vm270, %v948, 0
      %v960 = vsel %vm270, %v953, 0
      %962 = vmatprep.subr.mxu0 0.0
      %963 = vmatpush1.msra.mxu0 0.0
      %964 = vmatprep.subr.mxu0 0.0
      %965 = vmatpush1.msra.mxu0 0.0
      %966 = vmatprep.subr.mxu0 0.0
      %967 = vmatpush1.msra.mxu0 0.0
      %968 = vmatprep.subr.mxu0 0.0
      %969 = vmatpush1.msra.mxu0 0.0
      %970 = vmatprep.subr.mxu0 0.0
      %971 = vmatpush1.msra.mxu0 0.0
      %972 = vmatprep.subr.mxu0 0.0
      %973 = vmatpush1.msra.mxu0 0.0
      %974 = vmatprep.subr.mxu0 0.0
      %975 = vmatpush1.msra.mxu0 0.0
      %976 = vmatprep.subr.mxu0 0.0
      %977 = vmatpush1.msra.mxu0 0.0
      %978 = vmatprep.subr.mxu0 0.0
      %979 = vmatpush1.msra.mxu0 0.0
      %980 = vmatprep.subr.mxu0 0.0
      %981 = vmatpush1.msra.mxu0 0.0
      %982 = vmatprep.subr.mxu0 0.0
      %983 = vmatpush1.msra.mxu0 0.0
      %984 = vmatprep.subr.mxu0 0.0
      %985 = vmatpush1.msra.mxu0 0.0
      %986 = vmatprep.subr.mxu0 0.0
      %987 = vmatpush1.msra.mxu0 0.0
      %988 = vmatprep.subr.mxu0 0.0
      %989 = vmatpush1.msra.mxu0 0.0
      %990 = vmatprep.subr.mxu0 0.0
      %991 = vmatpush1.msra.mxu0 0.0
      %992 = vmatprep.subr.mxu0 0.0
      %993 = vmatpush1.msra.mxu0 %v279
      %994 = vmatprep.subr.mxu0 0.0
      %995 = vmatpush2.msra.mxu0 0.0
      %996 = vmatprep.subr.mxu0 0.0
      %997 = vmatpush2.msra.mxu0 0.0
      %998 = vmatprep.subr.mxu0 0.0
      %999 = vmatpush2.msra.mxu0 0.0
      %1000 = vmatprep.subr.mxu0 0.0
      %1001 = vmatpush2.msra.mxu0 0.0
      %1002 = vmatprep.subr.mxu0 0.0
      %1003 = vmatpush2.msra.mxu0 0.0
      %1004 = vmatprep.subr.mxu0 0.0
      %1005 = vmatpush2.msra.mxu0 0.0
      %1006 = vmatprep.subr.mxu0 0.0
      %1007 = vmatpush2.msra.mxu0 0.0
      %1008 = vmatprep.subr.mxu0 0.0
      %1009 = vmatpush2.msra.mxu0 0.0
      %1010 = vmatprep.subr.mxu0 0.0
      %1011 = vmatpush2.msra.mxu0 0.0
      %1012 = vmatprep.subr.mxu0 0.0
      %1013 = vmatpush2.msra.mxu0 0.0
      %1014 = vmatprep.subr.mxu0 0.0
      %1015 = vmatpush2.msra.mxu0 0.0
      %1016 = vmatprep.subr.mxu0 0.0
      %1017 = vmatpush2.msra.mxu0 0.0
      %1018 = vmatprep.subr.mxu0 0.0
      %1019 = vmatpush2.msra.mxu0 0.0
      %1020 = vmatprep.subr.mxu0 0.0
      %1021 = vmatpush2.msra.mxu0 0.0
      %1022 = vmatprep.subr.mxu0 0.0
      %1023 = vmatpush2.msra.mxu0 0.0
      %1024 = vmatprep.subr.mxu0 0.0
      %1025 = vmatpush2.msra.mxu0 0.0
      %1026 = vmatprep.mubr.f32.mxu0 0.0
      %1027 = vmatmul.mubr.f32.gmra.mxu0 %v957
      %v1028 = vpop.f32.mrf.mxu0
      %v1029 = vadd.f32 %v269, %v1028
      %v1030 = vpop.f32.mrf.mxu0
      %1031 = vmatprep.mubr.f32.mxu0 0.0
      %1032 = vmatmul.mubr.f32.gmra.mxu0 %v960
      %v1033 = vpop.f32.mrf.mxu0
      %v1034 = vadd.f32 %v269, %v1033
      %v1035 = vpop.f32.mrf.mxu0
      %1036 = vdwg.mxu0
      %v1037 = vmax.f32 %v1029, 0.0
      %v1038 = vmax.f32 %v1034, 0.0
      %v1039 = vmul.f32 %v1037, %v361
      %v1040 = vmul.f32 %v1038, %v361
      %v1041 = vsel %vm364, %v1039, 0.0
      %1042 = vadd.xlane.f32.xlu0 %v1041
      %v1043 = vpop.xlane.xlu0 %1042
      %v1044 = vsel %vm364, %v1040, 0.0
      %1045 = vadd.xlane.f32.xlu0 %v1044
      %v1046 = vpop.xlane.xlu0 %1045
      %s1047 = scalar_lea.vmem %s169, 80
      %v1048 = vld [vmem:[%s1047] sm:$0xff]
      %v1049 = vld [vmem:[%s1047 + $0x8] sm:$0xff]
      %1050 = vmatprep.subr.mxu0 0.0
      %1051 = vmatpush1.msra.mxu0 0.0
      %1052 = vmatprep.subr.mxu0 0.0
      %1053 = vmatpush1.msra.mxu0 0.0
      %1054 = vmatprep.subr.mxu0 0.0
      %1055 = vmatpush1.msra.mxu0 0.0
      %1056 = vmatprep.subr.mxu0 0.0
      %1057 = vmatpush1.msra.mxu0 0.0
      %1058 = vmatprep.subr.mxu0 0.0
      %1059 = vmatpush1.msra.mxu0 0.0
      %1060 = vmatprep.subr.mxu0 0.0
      %1061 = vmatpush1.msra.mxu0 0.0
      %1062 = vmatprep.subr.mxu0 0.0
      %1063 = vmatpush1.msra.mxu0 0.0
      %1064 = vmatprep.subr.mxu0 0.0
      %1065 = vmatpush1.msra.mxu0 0.0
      %1066 = vmatprep.subr.mxu0 0.0
      %1067 = vmatpush1.msra.mxu0 0.0
      %1068 = vmatprep.subr.mxu0 0.0
      %1069 = vmatpush1.msra.mxu0 0.0
      %1070 = vmatprep.subr.mxu0 0.0
      %1071 = vmatpush1.msra.mxu0 0.0
      %1072 = vmatprep.subr.mxu0 0.0
      %1073 = vmatpush1.msra.mxu0 0.0
      %1074 = vmatprep.subr.mxu0 0.0
      %1075 = vmatpush1.msra.mxu0 0.0
      %1076 = vmatprep.subr.mxu0 0.0
      %1077 = vmatpush1.msra.mxu0 0.0
      %1078 = vmatprep.subr.mxu0 0.0
      %1079 = vmatpush1.msra.mxu0 %v1049
      %1080 = vmatprep.subr.mxu0 0.0
      %1081 = vmatpush1.msra.mxu0 %v1048
      %1082 = vmatprep.subr.mxu0 0.0
      %1083 = vmatpush2.msra.mxu0 0.0
      %1084 = vmatprep.subr.mxu0 0.0
      %1085 = vmatpush2.msra.mxu0 0.0
      %1086 = vmatprep.subr.mxu0 0.0
      %1087 = vmatpush2.msra.mxu0 0.0
      %1088 = vmatprep.subr.mxu0 0.0
      %1089 = vmatpush2.msra.mxu0 0.0
      %1090 = vmatprep.subr.mxu0 0.0
      %1091 = vmatpush2.msra.mxu0 0.0
      %1092 = vmatprep.subr.mxu0 0.0
      %1093 = vmatpush2.msra.mxu0 0.0
      %1094 = vmatprep.subr.mxu0 0.0
      %1095 = vmatpush2.msra.mxu0 0.0
      %1096 = vmatprep.subr.mxu0 0.0
      %1097 = vmatpush2.msra.mxu0 0.0
      %1098 = vmatprep.subr.mxu0 0.0
      %1099 = vmatpush2.msra.mxu0 0.0
      %1100 = vmatprep.subr.mxu0 0.0
      %1101 = vmatpush2.msra.mxu0 0.0
      %1102 = vmatprep.subr.mxu0 0.0
      %1103 = vmatpush2.msra.mxu0 0.0
      %1104 = vmatprep.subr.mxu0 0.0
      %1105 = vmatpush2.msra.mxu0 0.0
      %1106 = vmatprep.subr.mxu0 0.0
      %1107 = vmatpush2.msra.mxu0 0.0
      %1108 = vmatprep.subr.mxu0 0.0
      %1109 = vmatpush2.msra.mxu0 0.0
      %1110 = vmatprep.subr.mxu0 0.0
      %1111 = vmatpush2.msra.mxu0 0.0
      %1112 = vmatprep.subr.mxu0 0.0
      %1113 = vmatpush2.msra.mxu0 0.0
      %1114 = vmatprep.mubr.f32.mxu0 0.0
      %1115 = vmatmul.mubr.f32.gmra.mxu0 %v186
      %v1116 = vpop.f32.mrf.mxu0
      %v1117 = vadd.f32 0.0, %v1116
      %v1118 = vpop.f32.mrf.mxu0
      %1119 = vmatprep.mubr.f32.mxu0 0.0
      %1120 = vmatmul.mubr.f32.gmra.mxu0 %v189
      %v1121 = vpop.f32.mrf.mxu0
      %v1122 = vadd.f32 0.0, %v1121
      %v1123 = vpop.f32.mrf.mxu0
      %1124 = vdwg.mxu0
      %v1126 = vsel %vm270, %v1117, 0
      %v1129 = vsel %vm270, %v1122, 0
      %1131 = vmatprep.subr.mxu0 0.0
      %1132 = vmatpush1.msra.mxu0 0.0
      %1133 = vmatprep.subr.mxu0 0.0
      %1134 = vmatpush1.msra.mxu0 0.0
      %1135 = vmatprep.subr.mxu0 0.0
      %1136 = vmatpush1.msra.mxu0 0.0
      %1137 = vmatprep.subr.mxu0 0.0
      %1138 = vmatpush1.msra.mxu0 0.0
      %1139 = vmatprep.subr.mxu0 0.0
      %1140 = vmatpush1.msra.mxu0 0.0
      %1141 = vmatprep.subr.mxu0 0.0
      %1142 = vmatpush1.msra.mxu0 0.0
      %1143 = vmatprep.subr.mxu0 0.0
      %1144 = vmatpush1.msra.mxu0 0.0
      %1145 = vmatprep.subr.mxu0 0.0
      %1146 = vmatpush1.msra.mxu0 0.0
      %1147 = vmatprep.subr.mxu0 0.0
      %1148 = vmatpush1.msra.mxu0 0.0
      %1149 = vmatprep.subr.mxu0 0.0
      %1150 = vmatpush1.msra.mxu0 0.0
      %1151 = vmatprep.subr.mxu0 0.0
      %1152 = vmatpush1.msra.mxu0 0.0
      %1153 = vmatprep.subr.mxu0 0.0
      %1154 = vmatpush1.msra.mxu0 0.0
      %1155 = vmatprep.subr.mxu0 0.0
      %1156 = vmatpush1.msra.mxu0 0.0
      %1157 = vmatprep.subr.mxu0 0.0
      %1158 = vmatpush1.msra.mxu0 0.0
      %1159 = vmatprep.subr.mxu0 0.0
      %1160 = vmatpush1.msra.mxu0 0.0
      %1161 = vmatprep.subr.mxu0 0.0
      %1162 = vmatpush1.msra.mxu0 %v279
      %1163 = vmatprep.subr.mxu0 0.0
      %1164 = vmatpush2.msra.mxu0 0.0
      %1165 = vmatprep.subr.mxu0 0.0
      %1166 = vmatpush2.msra.mxu0 0.0
      %1167 = vmatprep.subr.mxu0 0.0
      %1168 = vmatpush2.msra.mxu0 0.0
      %1169 = vmatprep.subr.mxu0 0.0
      %1170 = vmatpush2.msra.mxu0 0.0
      %1171 = vmatprep.subr.mxu0 0.0
      %1172 = vmatpush2.msra.mxu0 0.0
      %1173 = vmatprep.subr.mxu0 0.0
      %1174 = vmatpush2.msra.mxu0 0.0
      %1175 = vmatprep.subr.mxu0 0.0
      %1176 = vmatpush2.msra.mxu0 0.0
      %1177 = vmatprep.subr.mxu0 0.0
      %1178 = vmatpush2.msra.mxu0 0.0
      %1179 = vmatprep.subr.mxu0 0.0
      %1180 = vmatpush2.msra.mxu0 0.0
      %1181 = vmatprep.subr.mxu0 0.0
      %1182 = vmatpush2.msra.mxu0 0.0
      %1183 = vmatprep.subr.mxu0 0.0
      %1184 = vmatpush2.msra.mxu0 0.0
      %1185 = vmatprep.subr.mxu0 0.0
      %1186 = vmatpush2.msra.mxu0 0.0
      %1187 = vmatprep.subr.mxu0 0.0
      %1188 = vmatpush2.msra.mxu0 0.0
      %1189 = vmatprep.subr.mxu0 0.0
      %1190 = vmatpush2.msra.mxu0 0.0
      %1191 = vmatprep.subr.mxu0 0.0
      %1192 = vmatpush2.msra.mxu0 0.0
      %1193 = vmatprep.subr.mxu0 0.0
      %1194 = vmatpush2.msra.mxu0 0.0
      %1195 = vmatprep.mubr.f32.mxu0 0.0
      %1196 = vmatmul.mubr.f32.gmra.mxu0 %v1126
      %v1197 = vpop.f32.mrf.mxu0
      %v1198 = vadd.f32 %v269, %v1197
      %v1199 = vpop.f32.mrf.mxu0
      %1200 = vmatprep.mubr.f32.mxu0 0.0
      %1201 = vmatmul.mubr.f32.gmra.mxu0 %v1129
      %v1202 = vpop.f32.mrf.mxu0
      %v1203 = vadd.f32 %v269, %v1202
      %v1204 = vpop.f32.mrf.mxu0
      %1205 = vdwg.mxu0
      %v1206 = vmax.f32 %v1198, 0.0
      %v1207 = vmax.f32 %v1203, 0.0
      %v1208 = vmul.f32 %v1206, %v361
      %v1209 = vmul.f32 %v1207, %v361
      %v1210 = vsel %vm364, %v1208, 0.0
      %1211 = vadd.xlane.f32.xlu0 %v1210
      %v1212 = vpop.xlane.xlu0 %1211
      %v1213 = vsel %vm364, %v1209, 0.0
      %1214 = vadd.xlane.f32.xlu0 %v1213
      %v1215 = vpop.xlane.xlu0 %1214
      %s1216 = scalar_lea.vmem %s169, 96
      %v1217 = vld [vmem:[%s1216] sm:$0xff]
      %v1218 = vld [vmem:[%s1216 + $0x8] sm:$0xff]
      %1219 = vmatprep.subr.mxu0 0.0
      %1220 = vmatpush1.msra.mxu0 0.0
      %1221 = vmatprep.subr.mxu0 0.0
      %1222 = vmatpush1.msra.mxu0 0.0
      %1223 = vmatprep.subr.mxu0 0.0
      %1224 = vmatpush1.msra.mxu0 0.0
      %1225 = vmatprep.subr.mxu0 0.0
      %1226 = vmatpush1.msra.mxu0 0.0
      %1227 = vmatprep.subr.mxu0 0.0
      %1228 = vmatpush1.msra.mxu0 0.0
      %1229 = vmatprep.subr.mxu0 0.0
      %1230 = vmatpush1.msra.mxu0 0.0
      %1231 = vmatprep.subr.mxu0 0.0
      %1232 = vmatpush1.msra.mxu0 0.0
      %1233 = vmatprep.subr.mxu0 0.0
      %1234 = vmatpush1.msra.mxu0 0.0
      %1235 = vmatprep.subr.mxu0 0.0
      %1236 = vmatpush1.msra.mxu0 0.0
      %1237 = vmatprep.subr.mxu0 0.0
      %1238 = vmatpush1.msra.mxu0 0.0
      %1239 = vmatprep.subr.mxu0 0.0
      %1240 = vmatpush1.msra.mxu0 0.0
      %1241 = vmatprep.subr.mxu0 0.0
      %1242 = vmatpush1.msra.mxu0 0.0
      %1243 = vmatprep.subr.mxu0 0.0
      %1244 = vmatpush1.msra.mxu0 0.0
      %1245 = vmatprep.subr.mxu0 0.0
      %1246 = vmatpush1.msra.mxu0 0.0
      %1247 = vmatprep.subr.mxu0 0.0
      %1248 = vmatpush1.msra.mxu0 %v1218
      %1249 = vmatprep.subr.mxu0 0.0
      %1250 = vmatpush1.msra.mxu0 %v1217
      %1251 = vmatprep.subr.mxu0 0.0
      %1252 = vmatpush2.msra.mxu0 0.0
      %1253 = vmatprep.subr.mxu0 0.0
      %1254 = vmatpush2.msra.mxu0 0.0
      %1255 = vmatprep.subr.mxu0 0.0
      %1256 = vmatpush2.msra.mxu0 0.0
      %1257 = vmatprep.subr.mxu0 0.0
      %1258 = vmatpush2.msra.mxu0 0.0
      %1259 = vmatprep.subr.mxu0 0.0
      %1260 = vmatpush2.msra.mxu0 0.0
      %1261 = vmatprep.subr.mxu0 0.0
      %1262 = vmatpush2.msra.mxu0 0.0
      %1263 = vmatprep.subr.mxu0 0.0
      %1264 = vmatpush2.msra.mxu0 0.0
      %1265 = vmatprep.subr.mxu0 0.0
      %1266 = vmatpush2.msra.mxu0 0.0
      %1267 = vmatprep.subr.mxu0 0.0
      %1268 = vmatpush2.msra.mxu0 0.0
      %1269 = vmatprep.subr.mxu0 0.0
      %1270 = vmatpush2.msra.mxu0 0.0
      %1271 = vmatprep.subr.mxu0 0.0
      %1272 = vmatpush2.msra.mxu0 0.0
      %1273 = vmatprep.subr.mxu0 0.0
      %1274 = vmatpush2.msra.mxu0 0.0
      %1275 = vmatprep.subr.mxu0 0.0
      %1276 = vmatpush2.msra.mxu0 0.0
      %1277 = vmatprep.subr.mxu0 0.0
      %1278 = vmatpush2.msra.mxu0 0.0
      %1279 = vmatprep.subr.mxu0 0.0
      %1280 = vmatpush2.msra.mxu0 0.0
      %1281 = vmatprep.subr.mxu0 0.0
      %1282 = vmatpush2.msra.mxu0 0.0
      %1283 = vmatprep.mubr.f32.mxu0 0.0
      %1284 = vmatmul.mubr.f32.gmra.mxu0 %v186
      %v1285 = vpop.f32.mrf.mxu0
      %v1286 = vadd.f32 0.0, %v1285
      %v1287 = vpop.f32.mrf.mxu0
      %1288 = vmatprep.mubr.f32.mxu0 0.0
      %1289 = vmatmul.mubr.f32.gmra.mxu0 %v189
      %v1290 = vpop.f32.mrf.mxu0
      %v1291 = vadd.f32 0.0, %v1290
      %v1292 = vpop.f32.mrf.mxu0
      %1293 = vdwg.mxu0
      %v1295 = vsel %vm270, %v1286, 0
      %v1298 = vsel %vm270, %v1291, 0
      %1300 = vmatprep.subr.mxu0 0.0
      %1301 = vmatpush1.msra.mxu0 0.0
      %1302 = vmatprep.subr.mxu0 0.0
      %1303 = vmatpush1.msra.mxu0 0.0
      %1304 = vmatprep.subr.mxu0 0.0
      %1305 = vmatpush1.msra.mxu0 0.0
      %1306 = vmatprep.subr.mxu0 0.0
      %1307 = vmatpush1.msra.mxu0 0.0
      %1308 = vmatprep.subr.mxu0 0.0
      %1309 = vmatpush1.msra.mxu0 0.0
      %1310 = vmatprep.subr.mxu0 0.0
      %1311 = vmatpush1.msra.mxu0 0.0
      %1312 = vmatprep.subr.mxu0 0.0
      %1313 = vmatpush1.msra.mxu0 0.0
      %1314 = vmatprep.subr.mxu0 0.0
      %1315 = vmatpush1.msra.mxu0 0.0
      %1316 = vmatprep.subr.mxu0 0.0
      %1317 = vmatpush1.msra.mxu0 0.0
      %1318 = vmatprep.subr.mxu0 0.0
      %1319 = vmatpush1.msra.mxu0 0.0
      %1320 = vmatprep.subr.mxu0 0.0
      %1321 = vmatpush1.msra.mxu0 0.0
      %1322 = vmatprep.subr.mxu0 0.0
      %1323 = vmatpush1.msra.mxu0 0.0
      %1324 = vmatprep.subr.mxu0 0.0
      %1325 = vmatpush1.msra.mxu0 0.0
      %1326 = vmatprep.subr.mxu0 0.0
      %1327 = vmatpush1.msra.mxu0 0.0
      %1328 = vmatprep.subr.mxu0 0.0
      %1329 = vmatpush1.msra.mxu0 0.0
      %1330 = vmatprep.subr.mxu0 0.0
      %1331 = vmatpush1.msra.mxu0 %v279
      %1332 = vmatprep.subr.mxu0 0.0
      %1333 = vmatpush2.msra.mxu0 0.0
      %1334 = vmatprep.subr.mxu0 0.0
      %1335 = vmatpush2.msra.mxu0 0.0
      %1336 = vmatprep.subr.mxu0 0.0
      %1337 = vmatpush2.msra.mxu0 0.0
      %1338 = vmatprep.subr.mxu0 0.0
      %1339 = vmatpush2.msra.mxu0 0.0
      %1340 = vmatprep.subr.mxu0 0.0
      %1341 = vmatpush2.msra.mxu0 0.0
      %1342 = vmatprep.subr.mxu0 0.0
      %1343 = vmatpush2.msra.mxu0 0.0
      %1344 = vmatprep.subr.mxu0 0.0
      %1345 = vmatpush2.msra.mxu0 0.0
      %1346 = vmatprep.subr.mxu0 0.0
      %1347 = vmatpush2.msra.mxu0 0.0
      %1348 = vmatprep.subr.mxu0 0.0
      %1349 = vmatpush2.msra.mxu0 0.0
      %1350 = vmatprep.subr.mxu0 0.0
      %1351 = vmatpush2.msra.mxu0 0.0
      %1352 = vmatprep.subr.mxu0 0.0
      %1353 = vmatpush2.msra.mxu0 0.0
      %1354 = vmatprep.subr.mxu0 0.0
      %1355 = vmatpush2.msra.mxu0 0.0
      %1356 = vmatprep.subr.mxu0 0.0
      %1357 = vmatpush2.msra.mxu0 0.0
      %1358 = vmatprep.subr.mxu0 0.0
      %1359 = vmatpush2.msra.mxu0 0.0
      %1360 = vmatprep.subr.mxu0 0.0
      %1361 = vmatpush2.msra.mxu0 0.0
      %1362 = vmatprep.subr.mxu0 0.0
      %1363 = vmatpush2.msra.mxu0 0.0
      %1364 = vmatprep.mubr.f32.mxu0 0.0
      %1365 = vmatmul.mubr.f32.gmra.mxu0 %v1295
      %v1366 = vpop.f32.mrf.mxu0
      %v1367 = vadd.f32 %v269, %v1366
      %v1368 = vpop.f32.mrf.mxu0
      %1369 = vmatprep.mubr.f32.mxu0 0.0
      %1370 = vmatmul.mubr.f32.gmra.mxu0 %v1298
      %v1371 = vpop.f32.mrf.mxu0
      %v1372 = vadd.f32 %v269, %v1371
      %v1373 = vpop.f32.mrf.mxu0
      %1374 = vdwg.mxu0
      %v1375 = vmax.f32 %v1367, 0.0
      %v1376 = vmax.f32 %v1372, 0.0
      %v1377 = vmul.f32 %v1375, %v361
      %v1378 = vmul.f32 %v1376, %v361
      %v1379 = vsel %vm364, %v1377, 0.0
      %1380 = vadd.xlane.f32.xlu0 %v1379
      %v1381 = vpop.xlane.xlu0 %1380
      %v1382 = vsel %vm364, %v1378, 0.0
      %1383 = vadd.xlane.f32.xlu0 %v1382
      %v1384 = vpop.xlane.xlu0 %1383
      %s1385 = scalar_lea.vmem %s169, 112
      %v1386 = vld [vmem:[%s1385] sm:$0xff]
      %v1387 = vld [vmem:[%s1385 + $0x8] sm:$0xff]
      %1388 = vmatprep.subr.mxu0 0.0
      %1389 = vmatpush1.msra.mxu0 0.0
      %1390 = vmatprep.subr.mxu0 0.0
      %1391 = vmatpush1.msra.mxu0 0.0
      %1392 = vmatprep.subr.mxu0 0.0
      %1393 = vmatpush1.msra.mxu0 0.0
      %1394 = vmatprep.subr.mxu0 0.0
      %1395 = vmatpush1.msra.mxu0 0.0
      %1396 = vmatprep.subr.mxu0 0.0
      %1397 = vmatpush1.msra.mxu0 0.0
      %1398 = vmatprep.subr.mxu0 0.0
      %1399 = vmatpush1.msra.mxu0 0.0
      %1400 = vmatprep.subr.mxu0 0.0
      %1401 = vmatpush1.msra.mxu0 0.0
      %1402 = vmatprep.subr.mxu0 0.0
      %1403 = vmatpush1.msra.mxu0 0.0
      %1404 = vmatprep.subr.mxu0 0.0
      %1405 = vmatpush1.msra.mxu0 0.0
      %1406 = vmatprep.subr.mxu0 0.0
      %1407 = vmatpush1.msra.mxu0 0.0
      %1408 = vmatprep.subr.mxu0 0.0
      %1409 = vmatpush1.msra.mxu0 0.0
      %1410 = vmatprep.subr.mxu0 0.0
      %1411 = vmatpush1.msra.mxu0 0.0
      %1412 = vmatprep.subr.mxu0 0.0
      %1413 = vmatpush1.msra.mxu0 0.0
      %1414 = vmatprep.subr.mxu0 0.0
      %1415 = vmatpush1.msra.mxu0 0.0
      %1416 = vmatprep.subr.mxu0 0.0
      %1417 = vmatpush1.msra.mxu0 %v1387
      %1418 = vmatprep.subr.mxu0 0.0
      %1419 = vmatpush1.msra.mxu0 %v1386
      %1420 = vmatprep.subr.mxu0 0.0
      %1421 = vmatpush2.msra.mxu0 0.0
      %1422 = vmatprep.subr.mxu0 0.0
      %1423 = vmatpush2.msra.mxu0 0.0
      %1424 = vmatprep.subr.mxu0 0.0
      %1425 = vmatpush2.msra.mxu0 0.0
      %1426 = vmatprep.subr.mxu0 0.0
      %1427 = vmatpush2.msra.mxu0 0.0
      %1428 = vmatprep.subr.mxu0 0.0
      %1429 = vmatpush2.msra.mxu0 0.0
      %1430 = vmatprep.subr.mxu0 0.0
      %1431 = vmatpush2.msra.mxu0 0.0
      %1432 = vmatprep.subr.mxu0 0.0
      %1433 = vmatpush2.msra.mxu0 0.0
      %1434 = vmatprep.subr.mxu0 0.0
      %1435 = vmatpush2.msra.mxu0 0.0
      %1436 = vmatprep.subr.mxu0 0.0
      %1437 = vmatpush2.msra.mxu0 0.0
      %1438 = vmatprep.subr.mxu0 0.0
      %1439 = vmatpush2.msra.mxu0 0.0
      %1440 = vmatprep.subr.mxu0 0.0
      %1441 = vmatpush2.msra.mxu0 0.0
      %1442 = vmatprep.subr.mxu0 0.0
      %1443 = vmatpush2.msra.mxu0 0.0
      %1444 = vmatprep.subr.mxu0 0.0
      %1445 = vmatpush2.msra.mxu0 0.0
      %1446 = vmatprep.subr.mxu0 0.0
      %1447 = vmatpush2.msra.mxu0 0.0
      %1448 = vmatprep.subr.mxu0 0.0
      %1449 = vmatpush2.msra.mxu0 0.0
      %1450 = vmatprep.subr.mxu0 0.0
      %1451 = vmatpush2.msra.mxu0 0.0
      %1452 = vmatprep.mubr.f32.mxu0 0.0
      %1453 = vmatmul.mubr.f32.gmra.mxu0 %v186
      %v1454 = vpop.f32.mrf.mxu0
      %v1455 = vadd.f32 0.0, %v1454
      %v1456 = vpop.f32.mrf.mxu0
      %1457 = vmatprep.mubr.f32.mxu0 0.0
      %1458 = vmatmul.mubr.f32.gmra.mxu0 %v189
      %v1459 = vpop.f32.mrf.mxu0
      %v1460 = vadd.f32 0.0, %v1459
      %v1461 = vpop.f32.mrf.mxu0
      %1462 = vdwg.mxu0
      %v1464 = vsel %vm270, %v1455, 0
      %v1467 = vsel %vm270, %v1460, 0
      %1469 = vmatprep.subr.mxu0 0.0
      %1470 = vmatpush1.msra.mxu0 0.0
      %1471 = vmatprep.subr.mxu0 0.0
      %1472 = vmatpush1.msra.mxu0 0.0
      %1473 = vmatprep.subr.mxu0 0.0
      %1474 = vmatpush1.msra.mxu0 0.0
      %1475 = vmatprep.subr.mxu0 0.0
      %1476 = vmatpush1.msra.mxu0 0.0
      %1477 = vmatprep.subr.mxu0 0.0
      %1478 = vmatpush1.msra.mxu0 0.0
      %1479 = vmatprep.subr.mxu0 0.0
      %1480 = vmatpush1.msra.mxu0 0.0
      %1481 = vmatprep.subr.mxu0 0.0
      %1482 = vmatpush1.msra.mxu0 0.0
      %1483 = vmatprep.subr.mxu0 0.0
      %1484 = vmatpush1.msra.mxu0 0.0
      %1485 = vmatprep.subr.mxu0 0.0
      %1486 = vmatpush1.msra.mxu0 0.0
      %1487 = vmatprep.subr.mxu0 0.0
      %1488 = vmatpush1.msra.mxu0 0.0
      %1489 = vmatprep.subr.mxu0 0.0
      %1490 = vmatpush1.msra.mxu0 0.0
      %1491 = vmatprep.subr.mxu0 0.0
      %1492 = vmatpush1.msra.mxu0 0.0
      %1493 = vmatprep.subr.mxu0 0.0
      %1494 = vmatpush1.msra.mxu0 0.0
      %1495 = vmatprep.subr.mxu0 0.0
      %1496 = vmatpush1.msra.mxu0 0.0
      %1497 = vmatprep.subr.mxu0 0.0
      %1498 = vmatpush1.msra.mxu0 0.0
      %1499 = vmatprep.subr.mxu0 0.0
      %1500 = vmatpush1.msra.mxu0 %v279
      %1501 = vmatprep.subr.mxu0 0.0
      %1502 = vmatpush2.msra.mxu0 0.0
      %1503 = vmatprep.subr.mxu0 0.0
      %1504 = vmatpush2.msra.mxu0 0.0
      %1505 = vmatprep.subr.mxu0 0.0
      %1506 = vmatpush2.msra.mxu0 0.0
      %1507 = vmatprep.subr.mxu0 0.0
      %1508 = vmatpush2.msra.mxu0 0.0
      %1509 = vmatprep.subr.mxu0 0.0
      %1510 = vmatpush2.msra.mxu0 0.0
      %1511 = vmatprep.subr.mxu0 0.0
      %1512 = vmatpush2.msra.mxu0 0.0
      %1513 = vmatprep.subr.mxu0 0.0
      %1514 = vmatpush2.msra.mxu0 0.0
      %1515 = vmatprep.subr.mxu0 0.0
      %1516 = vmatpush2.msra.mxu0 0.0
      %1517 = vmatprep.subr.mxu0 0.0
      %1518 = vmatpush2.msra.mxu0 0.0
      %1519 = vmatprep.subr.mxu0 0.0
      %1520 = vmatpush2.msra.mxu0 0.0
      %1521 = vmatprep.subr.mxu0 0.0
      %1522 = vmatpush2.msra.mxu0 0.0
      %1523 = vmatprep.subr.mxu0 0.0
      %1524 = vmatpush2.msra.mxu0 0.0
      %1525 = vmatprep.subr.mxu0 0.0
      %1526 = vmatpush2.msra.mxu0 0.0
      %1527 = vmatprep.subr.mxu0 0.0
      %1528 = vmatpush2.msra.mxu0 0.0
      %1529 = vmatprep.subr.mxu0 0.0
      %1530 = vmatpush2.msra.mxu0 0.0
      %1531 = vmatprep.subr.mxu0 0.0
      %1532 = vmatpush2.msra.mxu0 0.0
      %1533 = vmatprep.mubr.f32.mxu0 0.0
      %1534 = vmatmul.mubr.f32.gmra.mxu0 %v1464
      %v1535 = vpop.f32.mrf.mxu0
      %v1536 = vadd.f32 %v269, %v1535
      %v1537 = vpop.f32.mrf.mxu0
      %1538 = vmatprep.mubr.f32.mxu0 0.0
      %1539 = vmatmul.mubr.f32.gmra.mxu0 %v1467
      %v1540 = vpop.f32.mrf.mxu0
      %v1541 = vadd.f32 %v269, %v1540
      %v1542 = vpop.f32.mrf.mxu0
      %1543 = vdwg.mxu0
      %v1544 = vmax.f32 %v1536, 0.0
      %v1545 = vmax.f32 %v1541, 0.0
      %v1546 = vmul.f32 %v1544, %v361
      %v1547 = vmul.f32 %v1545, %v361
      %v1548 = vsel %vm364, %v1546, 0.0
      %1549 = vadd.xlane.f32.xlu0 %v1548
      %v1550 = vpop.xlane.xlu0 %1549
      %v1551 = vsel %vm364, %v1547, 0.0
      %1552 = vadd.xlane.f32.xlu0 %v1551
      %v1553 = vpop.xlane.xlu0 %1552
      %vm1554 = vcmask 7168
      %v1555 = vsel %vm1554, %v367, %v536
      %v1556 = vsel %vm1554, %v370, %v539
      %vm1557 = vcmask 15360
      %v1558 = vsel %vm1557, %v1555, %v705
      %v1559 = vsel %vm1557, %v1556, %v708
      %vm1560 = vcmask 23552
      %v1561 = vsel %vm1560, %v1558, %v874
      %v1562 = vsel %vm1560, %v1559, %v877
      %v1563 = vsel %vm270, %v1561, %v1043
      %v1564 = vsel %vm270, %v1562, %v1046
      %vm1565 = vcmask 39936
      %v1566 = vsel %vm1565, %v1563, %v1212
      %v1567 = vsel %vm1565, %v1564, %v1215
      %vm1568 = vcmask 48128
      %v1569 = vsel %vm1568, %v1566, %v1381
      %v1570 = vsel %vm1568, %v1567, %v1384
      %vm1571 = vcmask 56320
      %v1572 = vsel %vm1571, %v1569, %v1550
      %v1573 = vsel %vm1571, %v1570, %v1553
      %s1575 = vtos %v181
      %v1576 = vstv %s1575
      %1578 = vmatprep.subr.mxu0 0.0
      %1579 = vmatpush1.msra.mxu0 0.0
      %1580 = vmatprep.subr.mxu0 0.0
      %1581 = vmatpush1.msra.mxu0 0.0
      %1582 = vmatprep.subr.mxu0 0.0
      %1583 = vmatpush1.msra.mxu0 0.0
      %1584 = vmatprep.subr.mxu0 0.0
      %1585 = vmatpush1.msra.mxu0 0.0
      %1586 = vmatprep.subr.mxu0 0.0
      %1587 = vmatpush1.msra.mxu0 0.0
      %1588 = vmatprep.subr.mxu0 0.0
      %1589 = vmatpush1.msra.mxu0 0.0
      %1590 = vmatprep.subr.mxu0 0.0
      %1591 = vmatpush1.msra.mxu0 0.0
      %1592 = vmatprep.subr.mxu0 0.0
      %1593 = vmatpush1.msra.mxu0 0.0
      %1594 = vmatprep.subr.mxu0 0.0
      %1595 = vmatpush1.msra.mxu0 0.0
      %1596 = vmatprep.subr.mxu0 0.0
      %1597 = vmatpush1.msra.mxu0 0.0
      %1598 = vmatprep.subr.mxu0 0.0
      %1599 = vmatpush1.msra.mxu0 0.0
      %1600 = vmatprep.subr.mxu0 0.0
      %1601 = vmatpush1.msra.mxu0 0.0
      %1602 = vmatprep.subr.mxu0 0.0
      %1603 = vmatpush1.msra.mxu0 0.0
      %1604 = vmatprep.subr.mxu0 0.0
      %1605 = vmatpush1.msra.mxu0 0.0
      %1606 = vmatprep.subr.mxu0 0.0
      %1607 = vmatpush1.msra.mxu0 %v1573
      %1608 = vmatprep.subr.mxu0 0.0
      %1609 = vmatpush1.msra.mxu0 %v1572
      %1610 = vmatprep.subr.mxu0 0.0
      %1611 = vmatpush2.msra.mxu0 0.0
      %1612 = vmatprep.subr.mxu0 0.0
      %1613 = vmatpush2.msra.mxu0 0.0
      %1614 = vmatprep.subr.mxu0 0.0
      %1615 = vmatpush2.msra.mxu0 0.0
      %1616 = vmatprep.subr.mxu0 0.0
      %1617 = vmatpush2.msra.mxu0 0.0
      %1618 = vmatprep.subr.mxu0 0.0
      %1619 = vmatpush2.msra.mxu0 0.0
      %1620 = vmatprep.subr.mxu0 0.0
      %1621 = vmatpush2.msra.mxu0 0.0
      %1622 = vmatprep.subr.mxu0 0.0
      %1623 = vmatpush2.msra.mxu0 0.0
      %1624 = vmatprep.subr.mxu0 0.0
      %1625 = vmatpush2.msra.mxu0 0.0
      %1626 = vmatprep.subr.mxu0 0.0
      %1627 = vmatpush2.msra.mxu0 0.0
      %1628 = vmatprep.subr.mxu0 0.0
      %1629 = vmatpush2.msra.mxu0 0.0
      %1630 = vmatprep.subr.mxu0 0.0
      %1631 = vmatpush2.msra.mxu0 0.0
      %1632 = vmatprep.subr.mxu0 0.0
      %1633 = vmatpush2.msra.mxu0 0.0
      %1634 = vmatprep.subr.mxu0 0.0
      %1635 = vmatpush2.msra.mxu0 0.0
      %1636 = vmatprep.subr.mxu0 0.0
      %1637 = vmatpush2.msra.mxu0 0.0
      %1638 = vmatprep.subr.mxu0 0.0
      %1639 = vmatpush2.msra.mxu0 0.0
      %1640 = vmatprep.subr.mxu0 0.0
      %1641 = vmatpush2.msra.mxu0 0.0
      %1642 = vmatprep.mubr.f32.mxu0 0.0
      %1643 = vmatmul.mubr.f32.gmra.mxu0 %v186
      %v1644 = vpop.f32.mrf.mxu0
      %v1645 = vadd.f32 %v1576, %v1644
      %v1646 = vpop.f32.mrf.mxu0
      %1647 = vmatprep.mubr.f32.mxu0 0.0
      %1648 = vmatmul.mubr.f32.gmra.mxu0 %v189
      %v1649 = vpop.f32.mrf.mxu0
      %v1650 = vadd.f32 %v1576, %v1649
      %v1651 = vpop.f32.mrf.mxu0
      %1652 = vdwg.mxu0
      %vm1653 = vcmask 64512
      %1654 = vst.msk [vmem:[%s175] sm:$0xff] %vm1653, %v1645
      %1655 = vst.msk [vmem:[%s175 + $0x8] sm:$0xff] %vm1653, %v1650
      %p1656 = scmp.lt.s32.totalorder %s14, 1
      %s1657 = scalar_select %p1656, %s14, 1
      %s1658 = smul.addr %s1657, 2
      %s1659 = smul.addr %s1658, 8
      %s1660 = scalar_lea.vmem %s3, %s1659
      // Predicated region
      $region33: #{gcn_forward.1} parent=31 // pred_check
        %p1661 = pneg %p100
      $region34: #{gcn_forward.1} parent=31 // pred_check_branch
        %1663 = sbr.rel (%p1661) target = $region36
      $region35: #{gcn_forward.1} parent=31 // pred_region
        _
      $region36: #{gcn_forward.1} parent=31 // pred_fallthru
        _
    $region32: #{gcn_forward.1} parent=5 // pred_fallthru
      _
    %p1664 = scmp.le.s32.totalorder 2, %s9
    // Predicated region
    $region37: #{gcn_forward.1} parent=5 // pred_check
      %p1665 = pneg %p1664
    $region38: #{gcn_forward.1} parent=5 // pred_check_branch
      %1667 = sbr.rel (%p1665) target = $region40
    $region39: #{gcn_forward.1} parent=5 // pred_region
      %s1668 = ssub.s32 %s9, 2
      // Predicated region
      $region41: #{gcn_forward.1} parent=39 // pred_check
        %p1669 = pneg %p106
      $region42: #{gcn_forward.1} parent=39 // pred_check_branch
        %1671 = sbr.rel (%p1669) target = $region44
      $region43: #{gcn_forward.1} parent=39 // pred_region
        %p1672 = scmp.lt.s32.totalorder %s15, 1
        %s1673 = scalar_select %p1672, %s15, 1
        %s1674 = smul.addr %s1673, 2
        %s1675 = smul.addr %s1674, 8
        %s1676 = scalar_lea.vmem %s3, %s1675
      $region44: #{gcn_forward.1} parent=39 // pred_fallthru
        _
    $region40: #{gcn_forward.1} parent=5 // pred_fallthru
      _
  $region6: #{gcn_forward.1} parent=0 // loop_footer
    %s13 = sadd.s32 1, %s9
  $region7: #{gcn_forward.1} parent=0 // loop_footer_branch
    %8 = sbr.rel target = $region3
  $region8: #{gcn_forward.1} parent=0 // loop_exit
    _

</llo_original>
